<compile_context>
chip_gen: v6e
topology: v6e:2x2x1
jax: 0.10.0
libtpu: 0.0.40
codegen_flags: <defaults>
</compile_context>

<pallas_src>
import functools

import jax
import jax.numpy as jnp
import numpy as np
from jax import lax
from jax.experimental import pallas as pl
from jax.experimental.pallas import tpu as pltpu


# ----------------------------- Pallas kernel -----------------------------

def _mhsa_kernel(x_ref,        # VMEM (TBN, D)
                 wqkv_ref,     # VMEM (D, 3*inner)   packed [Q | K | V] cols, scale folded into Q
                 wo_ref,       # VMEM (inner, D)
                 bo_ref,       # VMEM (1, D)
                 fill_ref,     # VMEM (TBN, TBN)     0 (keep) / -987654321 (overwrite) / -1e30 (x-batch)
                 o_ref,        # VMEM (TBN, D)
                 o_scr,        # VMEM scratch (TBN, inner)
                 *, heads, dim_head):
    x = x_ref[...]
    fill = fill_ref[...]
    keep = fill == jnp.float32(0.0)          # hoisted once; kept positions <=> fill == 0

    dn_mm = (((1,), (0,)), ((), ()))         # standard (M,K) x (K,N)
    dn_qk = (((1,), (1,)), ((), ()))         # (M,dh) x (N,dh) contracting dh -> (M,N)

    inner = heads * dim_head

    # Single lane-dense projection GEMM for all heads and Q/K/V at once.
    qkv = lax.dot_general(x, wqkv_ref[...], dn_mm,
                          preferred_element_type=jnp.float32)          # (TBN, 3*inner)

    for h in range(heads):                   # static unroll; live range bounded by o_scr stores
        q = qkv[:, h * dim_head:(h + 1) * dim_head]                    # (TBN, dh)
        k = qkv[:, inner + h * dim_head:inner + (h + 1) * dim_head]
        v = qkv[:, 2 * inner + h * dim_head:2 * inner + (h + 1) * dim_head]

        # merged block-diagonal scores over the TB batches in this block
        s = lax.dot_general(q, k, dn_qk, preferred_element_type=jnp.float32)   # (TBN, TBN)
        # reproduces dots[mask==1] = -987654321 and excludes cross-batch positions
        s = jnp.where(keep, s, fill)

        s = s - jnp.max(s, axis=-1, keepdims=True)
        p = jnp.exp(s)
        p = p * pl.reciprocal(jnp.sum(p, axis=-1, keepdims=True), approx=True)

        o_h = lax.dot_general(p, v, dn_mm, preferred_element_type=jnp.float32)  # (TBN, dh)
        o_scr[:, h * dim_head:(h + 1) * dim_head] = o_h                         # lane-slab write

    # Single fused output projection (K = inner = 32) + bias.
    out = lax.dot_general(o_scr[...], wo_ref[...], dn_mm,
                          preferred_element_type=jnp.float32)
    o_ref[...] = (out + bo_ref[...]).astype(o_ref.dtype)
    # TODO(synk): output store is 32/128-lane masked (D=32); a lane-dense store would need an
    # in-kernel transpose that costs more than it saves at this size.


# ----------------------------- wrapper -----------------------------

def mhsa_time_series(x, w_qkv, w_out, b_out, scale, mask, *, heads, dim_head,
                     batch_tile=None):
    """x: (B, N, D) float32 -> (B, N, D) float32."""
    B, N, D = x.shape
    inner = heads * dim_head
    assert w_qkv.shape == (D, 3 * inner)
    assert w_out.shape == (inner, D)
    assert mask.shape == (N, N)
    assert scale.shape == (heads,)

    if batch_tile is None:
        divisors = [tb for tb in range(1, B + 1) if B % tb == 0]

        def ok(tb):  # sublane alignment of the merged block (or single full block)
            return (tb * N) % 8 == 0 or tb == B

        # prefer merged blocks <= 128 rows AND grid >= 2 (so v7x's two TCs both get work)
        cands = [tb for tb in divisors if ok(tb) and tb * N <= 128 and B // tb >= 2]
        if not cands:
            cands = [tb for tb in divisors if ok(tb) and tb * N <= 128]
        if not cands:
            cands = [tb for tb in divisors if ok(tb)]
        batch_tile = max(cands)
    TB = batch_tile
    assert B % TB == 0
    assert TB == B or (TB * N) % 8 == 0, "block second-minor dim must be a multiple of 8"
    TBN = TB * N

    # --- host-side parameter preprocessing (free in XLA) ---
    w_q, w_k, w_v = jnp.split(w_qkv, 3, axis=1)                  # each (D, inner), head-major cols
    w_q = w_q * jnp.repeat(scale, dim_head)[None, :]             # fold learned per-head scale into Q
    w_qkv_packed = jnp.concatenate([w_q, w_k, w_v], axis=1)      # (D, 3*inner), lane-dense

    # --- merged (TBN, TBN) fill constant (keep <=> fill == 0) ---
    ts_mask = np.asarray(mask) > 0.5                             # positions that get overwritten
    eye_tb = np.eye(TB, dtype=bool)
    same_batch = np.kron(eye_tb, np.ones((N, N), dtype=bool))
    overwritten = np.kron(eye_tb, ts_mask)
    fill = np.where(overwritten, np.float32(-987654321.0),
                    np.where(same_batch, np.float32(0.0),
                             np.float32(-1e30))).astype(np.float32)

    kernel = functools.partial(_mhsa_kernel, heads=heads, dim_head=dim_head)

    grid_spec = pltpu.PrefetchScalarGridSpec(
        num_scalar_prefetch=0,
        grid=(B // TB,),
        in_specs=[
            pl.BlockSpec((TBN, D), lambda b: (b, 0)),            # x, flattened (B*N, D)
            pl.BlockSpec((D, 3 * inner), lambda b: (0, 0)),      # packed QKV weights (2-D, dense)
            pl.BlockSpec((inner, D), lambda b: (0, 0)),          # W_out (2-D, dense)
            pl.BlockSpec((1, D), lambda b: (0, 0)),              # bias
            pl.BlockSpec((TBN, TBN), lambda b: (0, 0)),          # fill mask
        ],
        out_specs=pl.BlockSpec((TBN, D), lambda b: (b, 0)),
        scratch_shapes=[pltpu.VMEM((TBN, inner), jnp.float32)],  # per-block head-concat buffer
    )

    out2d = pl.pallas_call(
        kernel,
        out_shape=jax.ShapeDtypeStruct((B * N, D), jnp.float32),
        grid_spec=grid_spec,
        compiler_params=pltpu.CompilerParams(
            dimension_semantics=("parallel",)),
    )(x.reshape(B * N, D), w_qkv_packed, w_out, b_out.reshape(1, D), jnp.asarray(fill))

    return out2d.reshape(B, N, D)


# ----------------------------- parameter / mask setup -----------------------------

def build_time_series_mask(num_patches, num_time_steps=3):
    """Exact reproduction of the mask-building loops in MHSA_time_series.__init__."""
    n = num_patches * num_time_steps
    m = np.zeros((n, n), dtype=np.float32)
    for t in range(num_time_steps):
        s = t * num_patches
        m[s:s + num_patches, s:s + num_patches] = 1
    for t in range(1, num_time_steps):
        s = t * num_patches
        prev = (t - 1) * num_patches
        m[s:s + num_patches, prev:prev + num_patches] = 1
        nxt = (t + 1) * num_patches
        if t < num_time_steps - 1:
            m[s:s + num_patches, nxt:nxt + num_patches] = 1
    return m


def xavier_normal(key, shape):
    fan_in, fan_out = shape[0], shape[1]
    std = float(np.sqrt(2.0 / (fan_in + fan_out)))
    return jax.random.normal(key, shape, dtype=jnp.float32) * std


# ----------------------------- pure-JAX reference -----------------------------

def mhsa_reference(x, w_qkv, w_out, b_out, scale, mask, *, heads, dim_head):
    B, N, D = x.shape
    inner = heads * dim_head
    qkv = x @ w_qkv
    q, k, v = jnp.split(qkv, 3, axis=-1)

    def split_heads(t):
        return t.reshape(B, N, heads, dim_head).transpose(0, 2, 1, 3)

    q, k, v = map(split_heads, (q, k, v))
    dots = jnp.einsum('bhid,bhjd->bhij', q, k) * scale[None, :, None, None]
    dots = jnp.where(mask[None, None] > 0.5, jnp.float32(-987654321.0), dots)
    attn = jax.nn.softmax(dots, axis=-1)
    out = jnp.einsum('bhij,bhjd->bhid', attn, v)
    out = out.transpose(0, 2, 1, 3).reshape(B, N, inner)
    return out @ w_out + b_out[None, None, :]


# ----------------------------- main -----------------------------

if __name__ == "__main__":
    B = 16
    num_patches = 4
    num_time_steps = 3
    N = num_patches * num_time_steps          # 12
    D = 32                                    # model dim
    heads = 4
    dim_head = 8
    inner = heads * dim_head                  # 32

    key = jax.random.PRNGKey(0)
    kx, kqkv, kout = jax.random.split(key, 3)

    x = jax.random.normal(kx, (B, N, D), dtype=jnp.float32)

    # Deterministic parameter init (xavier-normal weights, zero bias), stored as (in, out).
    w_qkv = xavier_normal(kqkv, (D, 3 * inner))
    w_out = xavier_normal(kout, (inner, D))
    b_out = jnp.zeros((D,), dtype=jnp.float32)
    scale = jnp.full((heads,), dim_head ** (-0.5), dtype=jnp.float32)   # learned per-head scale

    mask = jnp.asarray(build_time_series_mask(num_patches, num_time_steps))

    y = mhsa_time_series(x, w_qkv, w_out, b_out, scale, mask,
                         heads=heads, dim_head=dim_head)
    y = jax.block_until_ready(y)

    y_ref = mhsa_reference(x, w_qkv, w_out, b_out, scale, mask,
                           heads=heads, dim_head=dim_head)
    # tolerance relaxed for the approximate (EUP) softmax reciprocal
    np.testing.assert_allclose(np.asarray(y), np.asarray(y_ref), rtol=5e-3, atol=5e-3)

    print("KERNEL_OK")
</pallas_src>

<mosaic_0001>
module attributes {stable_mosaic.version = 11 : i64} {
  func.func @_mhsa_kernel(%arg0: i32, %arg1: memref<96x32xf32, #tpu.memory_space<vmem>>, %arg2: memref<32x96xf32, #tpu.memory_space<vmem>>, %arg3: memref<32x32xf32, #tpu.memory_space<vmem>>, %arg4: memref<1x32xf32, #tpu.memory_space<vmem>>, %arg5: memref<96x96xf32, #tpu.memory_space<vmem>>, %arg6: memref<96x32xf32, #tpu.memory_space<vmem>>, %arg7: memref<96x32xf32, #tpu.memory_space<vmem>>) attributes {dimension_semantics = [#tpu.dimension_semantics<parallel>], iteration_bounds = array<i64: 2>, scalar_prefetch = 0 : i64, scratch_operands = 1 : i64, tpu.core_type = #tpu.core_type<tc>, window_params = [{transform_indices = @transform_0, window_bounds = array<i64: 96, 32>}, {pipeline_mode = #tpu.pipeline_mode<synchronous>, transform_indices = @transform_1, window_bounds = array<i64: 32, 96>}, {pipeline_mode = #tpu.pipeline_mode<synchronous>, transform_indices = @transform_2, window_bounds = array<i64: 32, 32>}, {pipeline_mode = #tpu.pipeline_mode<synchronous>, transform_indices = @transform_3, window_bounds = array<i64: 1, 32>}, {pipeline_mode = #tpu.pipeline_mode<synchronous>, transform_indices = @transform_4, window_bounds = array<i64: 96, 96>}, {transform_indices = @transform_5, window_bounds = array<i64: 96, 32>}]} {
    %c0 = arith.constant 0 : index
    %c0_0 = arith.constant 0 : index
    %0 = vector.load %arg1[%c0, %c0_0] : memref<96x32xf32, #tpu.memory_space<vmem>>, vector<96x32xf32>
    %c0_1 = arith.constant 0 : index
    %c0_2 = arith.constant 0 : index
    %1 = vector.load %arg5[%c0_1, %c0_2] : memref<96x96xf32, #tpu.memory_space<vmem>>, vector<96x96xf32>
    %cst = arith.constant 0.000000e+00 : f32
    %2 = vector.broadcast %cst : f32 to vector<96x96xf32>
    %3 = arith.cmpf oeq, %1, %2 : vector<96x96xf32>
    %c0_3 = arith.constant 0 : index
    %c0_4 = arith.constant 0 : index
    %4 = vector.load %arg2[%c0_3, %c0_4] : memref<32x96xf32, #tpu.memory_space<vmem>>, vector<32x96xf32>
    %cst_5 = arith.constant dense<0.000000e+00> : vector<96x96xf32>
    %5 = tpu.matmul %0, %4, %cst_5 {dimension_numbers = #tpu.dot_dimension_numbers<[1], [0], [0], [1], [0, 0, 1, 1], [], []>} : vector<96x32xf32>, vector<32x96xf32>, vector<96x96xf32> -> vector<96x96xf32>
    %6 = vector.extract_strided_slice %5 {offsets = [0, 0], sizes = [96, 8], strides = [1, 1]} : vector<96x96xf32> to vector<96x8xf32>
    %7 = vector.extract_strided_slice %5 {offsets = [0, 32], sizes = [96, 8], strides = [1, 1]} : vector<96x96xf32> to vector<96x8xf32>
    %8 = vector.extract_strided_slice %5 {offsets = [0, 64], sizes = [96, 8], strides = [1, 1]} : vector<96x96xf32> to vector<96x8xf32>
    %cst_6 = arith.constant dense<0.000000e+00> : vector<96x96xf32>
    %9 = tpu.matmul %6, %7, %cst_6 {dimension_numbers = #tpu.dot_dimension_numbers<[1], [1], [0], [0], [0, 0, 1, 0], [], []>} : vector<96x8xf32>, vector<96x8xf32>, vector<96x96xf32> -> vector<96x96xf32>
    %10 = arith.select %3, %9, %1 : vector<96x96xi1>, vector<96x96xf32>
    %cst_7 = arith.constant dense<0xFF800000> : vector<96xf32>
    %11 = vector.multi_reduction <maximumf>, %10, %cst_7 [1] : vector<96x96xf32> to vector<96xf32>
    %12 = vector.shape_cast %11 : vector<96xf32> to vector<96x1xf32>
    %13 = vector.broadcast %12 : vector<96x1xf32> to vector<96x96xf32>
    %14 = arith.subf %10, %13 : vector<96x96xf32>
    %15 = math.exp %14 : vector<96x96xf32>
    %cst_8 = arith.constant dense<0.000000e+00> : vector<96xf32>
    %16 = vector.multi_reduction <add>, %15, %cst_8 [1] : vector<96x96xf32> to vector<96xf32>
    %17 = vector.shape_cast %16 : vector<96xf32> to vector<96x1xf32>
    %18 = tpu.reciprocal %17 {approx = true} : vector<96x1xf32> -> vector<96x1xf32>
    %19 = vector.broadcast %18 : vector<96x1xf32> to vector<96x96xf32>
    %20 = arith.mulf %15, %19 : vector<96x96xf32>
    %cst_9 = arith.constant dense<0.000000e+00> : vector<96x8xf32>
    %21 = tpu.matmul %20, %8, %cst_9 {dimension_numbers = #tpu.dot_dimension_numbers<[1], [0], [0], [1], [0, 0, 1, 1], [], []>} : vector<96x96xf32>, vector<96x8xf32>, vector<96x8xf32> -> vector<96x8xf32>
    %c0_10 = arith.constant 0 : index
    %c0_11 = arith.constant 0 : index
    %22 = vector.load %arg7[%c0_10, %c0_11] : memref<96x32xf32, #tpu.memory_space<vmem>>, vector<96x8xf32>
    tpu.vector_store %arg7[%c0_10, %c0_11], %21 {strides = array<i32>} : memref<96x32xf32, #tpu.memory_space<vmem>>, vector<96x8xf32>,
    %23 = vector.extract_strided_slice %5 {offsets = [0, 8], sizes = [96, 8], strides = [1, 1]} : vector<96x96xf32> to vector<96x8xf32>
    %24 = vector.extract_strided_slice %5 {offsets = [0, 40], sizes = [96, 8], strides = [1, 1]} : vector<96x96xf32> to vector<96x8xf32>
    %25 = vector.extract_strided_slice %5 {offsets = [0, 72], sizes = [96, 8], strides = [1, 1]} : vector<96x96xf32> to vector<96x8xf32>
    %cst_12 = arith.constant dense<0.000000e+00> : vector<96x96xf32>
    %26 = tpu.matmul %23, %24, %cst_12 {dimension_numbers = #tpu.dot_dimension_numbers<[1], [1], [0], [0], [0, 0, 1, 0], [], []>} : vector<96x8xf32>, vector<96x8xf32>, vector<96x96xf32> -> vector<96x96xf32>
    %27 = arith.select %3, %26, %1 : vector<96x96xi1>, vector<96x96xf32>
    %cst_13 = arith.constant dense<0xFF800000> : vector<96xf32>
    %28 = vector.multi_reduction <maximumf>, %27, %cst_13 [1] : vector<96x96xf32> to vector<96xf32>
    %29 = vector.shape_cast %28 : vector<96xf32> to vector<96x1xf32>
    %30 = vector.broadcast %29 : vector<96x1xf32> to vector<96x96xf32>
    %31 = arith.subf %27, %30 : vector<96x96xf32>
    %32 = math.exp %31 : vector<96x96xf32>
    %cst_14 = arith.constant dense<0.000000e+00> : vector<96xf32>
    %33 = vector.multi_reduction <add>, %32, %cst_14 [1] : vector<96x96xf32> to vector<96xf32>
    %34 = vector.shape_cast %33 : vector<96xf32> to vector<96x1xf32>
    %35 = tpu.reciprocal %34 {approx = true} : vector<96x1xf32> -> vector<96x1xf32>
    %36 = vector.broadcast %35 : vector<96x1xf32> to vector<96x96xf32>
    %37 = arith.mulf %32, %36 : vector<96x96xf32>
    %cst_15 = arith.constant dense<0.000000e+00> : vector<96x8xf32>
    %38 = tpu.matmul %37, %25, %cst_15 {dimension_numbers = #tpu.dot_dimension_numbers<[1], [0], [0], [1], [0, 0, 1, 1], [], []>} : vector<96x96xf32>, vector<96x8xf32>, vector<96x8xf32> -> vector<96x8xf32>
    %c0_16 = arith.constant 0 : index
    %c8 = arith.constant 8 : index
    %39 = vector.load %arg7[%c0_16, %c8] : memref<96x32xf32, #tpu.memory_space<vmem>>, vector<96x8xf32>
    tpu.vector_store %arg7[%c0_16, %c8], %38 {strides = array<i32>} : memref<96x32xf32, #tpu.memory_space<vmem>>, vector<96x8xf32>,
    %40 = vector.extract_strided_slice %5 {offsets = [0, 16], sizes = [96, 8], strides = [1, 1]} : vector<96x96xf32> to vector<96x8xf32>
    %41 = vector.extract_strided_slice %5 {offsets = [0, 48], sizes = [96, 8], strides = [1, 1]} : vector<96x96xf32> to vector<96x8xf32>
    %42 = vector.extract_strided_slice %5 {offsets = [0, 80], sizes = [96, 8], strides = [1, 1]} : vector<96x96xf32> to vector<96x8xf32>
    %cst_17 = arith.constant dense<0.000000e+00> : vector<96x96xf32>
    %43 = tpu.matmul %40, %41, %cst_17 {dimension_numbers = #tpu.dot_dimension_numbers<[1], [1], [0], [0], [0, 0, 1, 0], [], []>} : vector<96x8xf32>, vector<96x8xf32>, vector<96x96xf32> -> vector<96x96xf32>
    %44 = arith.select %3, %43, %1 : vector<96x96xi1>, vector<96x96xf32>
    %cst_18 = arith.constant dense<0xFF800000> : vector<96xf32>
    %45 = vector.multi_reduction <maximumf>, %44, %cst_18 [1] : vector<96x96xf32> to vector<96xf32>
    %46 = vector.shape_cast %45 : vector<96xf32> to vector<96x1xf32>
    %47 = vector.broadcast %46 : vector<96x1xf32> to vector<96x96xf32>
    %48 = arith.subf %44, %47 : vector<96x96xf32>
    %49 = math.exp %48 : vector<96x96xf32>
    %cst_19 = arith.constant dense<0.000000e+00> : vector<96xf32>
    %50 = vector.multi_reduction <add>, %49, %cst_19 [1] : vector<96x96xf32> to vector<96xf32>
    %51 = vector.shape_cast %50 : vector<96xf32> to vector<96x1xf32>
    %52 = tpu.reciprocal %51 {approx = true} : vector<96x1xf32> -> vector<96x1xf32>
    %53 = vector.broadcast %52 : vector<96x1xf32> to vector<96x96xf32>
    %54 = arith.mulf %49, %53 : vector<96x96xf32>
    %cst_20 = arith.constant dense<0.000000e+00> : vector<96x8xf32>
    %55 = tpu.matmul %54, %42, %cst_20 {dimension_numbers = #tpu.dot_dimension_numbers<[1], [0], [0], [1], [0, 0, 1, 1], [], []>} : vector<96x96xf32>, vector<96x8xf32>, vector<96x8xf32> -> vector<96x8xf32>
    %c0_21 = arith.constant 0 : index
    %c16 = arith.constant 16 : index
    %56 = vector.load %arg7[%c0_21, %c16] : memref<96x32xf32, #tpu.memory_space<vmem>>, vector<96x8xf32>
    tpu.vector_store %arg7[%c0_21, %c16], %55 {strides = array<i32>} : memref<96x32xf32, #tpu.memory_space<vmem>>, vector<96x8xf32>,
    %57 = vector.extract_strided_slice %5 {offsets = [0, 24], sizes = [96, 8], strides = [1, 1]} : vector<96x96xf32> to vector<96x8xf32>
    %58 = vector.extract_strided_slice %5 {offsets = [0, 56], sizes = [96, 8], strides = [1, 1]} : vector<96x96xf32> to vector<96x8xf32>
    %59 = vector.extract_strided_slice %5 {offsets = [0, 88], sizes = [96, 8], strides = [1, 1]} : vector<96x96xf32> to vector<96x8xf32>
    %cst_22 = arith.constant dense<0.000000e+00> : vector<96x96xf32>
    %60 = tpu.matmul %57, %58, %cst_22 {dimension_numbers = #tpu.dot_dimension_numbers<[1], [1], [0], [0], [0, 0, 1, 0], [], []>} : vector<96x8xf32>, vector<96x8xf32>, vector<96x96xf32> -> vector<96x96xf32>
    %61 = arith.select %3, %60, %1 : vector<96x96xi1>, vector<96x96xf32>
    %cst_23 = arith.constant dense<0xFF800000> : vector<96xf32>
    %62 = vector.multi_reduction <maximumf>, %61, %cst_23 [1] : vector<96x96xf32> to vector<96xf32>
    %63 = vector.shape_cast %62 : vector<96xf32> to vector<96x1xf32>
    %64 = vector.broadcast %63 : vector<96x1xf32> to vector<96x96xf32>
    %65 = arith.subf %61, %64 : vector<96x96xf32>
    %66 = math.exp %65 : vector<96x96xf32>
    %cst_24 = arith.constant dense<0.000000e+00> : vector<96xf32>
    %67 = vector.multi_reduction <add>, %66, %cst_24 [1] : vector<96x96xf32> to vector<96xf32>
    %68 = vector.shape_cast %67 : vector<96xf32> to vector<96x1xf32>
    %69 = tpu.reciprocal %68 {approx = true} : vector<96x1xf32> -> vector<96x1xf32>
    %70 = vector.broadcast %69 : vector<96x1xf32> to vector<96x96xf32>
    %71 = arith.mulf %66, %70 : vector<96x96xf32>
    %cst_25 = arith.constant dense<0.000000e+00> : vector<96x8xf32>
    %72 = tpu.matmul %71, %59, %cst_25 {dimension_numbers = #tpu.dot_dimension_numbers<[1], [0], [0], [1], [0, 0, 1, 1], [], []>} : vector<96x96xf32>, vector<96x8xf32>, vector<96x8xf32> -> vector<96x8xf32>
    %c0_26 = arith.constant 0 : index
    %c24 = arith.constant 24 : index
    %73 = vector.load %arg7[%c0_26, %c24] : memref<96x32xf32, #tpu.memory_space<vmem>>, vector<96x8xf32>
    tpu.vector_store %arg7[%c0_26, %c24], %72 {strides = array<i32>} : memref<96x32xf32, #tpu.memory_space<vmem>>, vector<96x8xf32>,
    %c0_27 = arith.constant 0 : index
    %c0_28 = arith.constant 0 : index
    %74 = vector.load %arg7[%c0_27, %c0_28] : memref<96x32xf32, #tpu.memory_space<vmem>>, vector<96x32xf32>
    %c0_29 = arith.constant 0 : index
    %c0_30 = arith.constant 0 : index
    %75 = vector.load %arg3[%c0_29, %c0_30] : memref<32x32xf32, #tpu.memory_space<vmem>>, vector<32x32xf32>
    %cst_31 = arith.constant dense<0.000000e+00> : vector<96x32xf32>
    %76 = tpu.matmul %74, %75, %cst_31 {dimension_numbers = #tpu.dot_dimension_numbers<[1], [0], [0], [1], [0, 0, 1, 1], [], []>} : vector<96x32xf32>, vector<32x32xf32>, vector<96x32xf32> -> vector<96x32xf32>
    %c0_32 = arith.constant 0 : index
    %c0_33 = arith.constant 0 : index
    %77 = vector.load %arg4[%c0_32, %c0_33] : memref<1x32xf32, #tpu.memory_space<vmem>>, vector<1x32xf32>
    %78 = vector.broadcast %77 : vector<1x32xf32> to vector<96x32xf32>
    %79 = arith.addf %76, %78 : vector<96x32xf32>
    %c0_34 = arith.constant 0 : index
    %c0_35 = arith.constant 0 : index
    %80 = vector.load %arg6[%c0_34, %c0_35] : memref<96x32xf32, #tpu.memory_space<vmem>>, vector<96x32xf32>
    tpu.vector_store %arg6[%c0_34, %c0_35], %79 {strides = array<i32>} : memref<96x32xf32, #tpu.memory_space<vmem>>, vector<96x32xf32>,
    return
  }
  func.func @transform_0(%arg0: i32) -> (i32, i32) {
    %c0_i32 = arith.constant 0 : i32
    %c0_i32_0 = arith.constant 0 : i32
    return %arg0, %c0_i32 : i32, i32
  }
  func.func @transform_1(%arg0: i32) -> (i32, i32) {
    %c0_i32 = arith.constant 0 : i32
    %c0_i32_0 = arith.constant 0 : i32
    %c0_i32_1 = arith.constant 0 : i32
    return %c0_i32, %c0_i32_0 : i32, i32
  }
  func.func @transform_2(%arg0: i32) -> (i32, i32) {
    %c0_i32 = arith.constant 0 : i32
    %c0_i32_0 = arith.constant 0 : i32
    %c0_i32_1 = arith.constant 0 : i32
    return %c0_i32, %c0_i32_0 : i32, i32
  }
  func.func @transform_3(%arg0: i32) -> (i32, i32) {
    %c0_i32 = arith.constant 0 : i32
    %c0_i32_0 = arith.constant 0 : i32
    %c0_i32_1 = arith.constant 0 : i32
    return %c0_i32, %c0_i32_0 : i32, i32
  }
  func.func @transform_4(%arg0: i32) -> (i32, i32) {
    %c0_i32 = arith.constant 0 : i32
    %c0_i32_0 = arith.constant 0 : i32
    %c0_i32_1 = arith.constant 0 : i32
    return %c0_i32, %c0_i32_0 : i32, i32
  }
  func.func @transform_5(%arg0: i32) -> (i32, i32) {
    %c0_i32 = arith.constant 0 : i32
    %c0_i32_0 = arith.constant 0 : i32
    return %arg0, %c0_i32 : i32, i32
  }
}

</mosaic_0001>

<llo_original>
// kernel: tpu_custom_call.1
$region0: #{tpu_custom_call.1}
  #allocation0 [shape = 'u32[]', space=smem, size = 0x4, offset = 0x4, fixed_abs, tag = 'smem constant byte address 0x4 - core index']
  #allocation1 [shape = 'u32[144,128]{1,0:T(1,128)}', space=vmem, size = 0x12000, scoped, tag = 'internal scratch']
  #allocation2 [shape = 'f32[96,32]{1,0:T(8,128)}', space=vmem, size = 0xc000, scoped, tag = 'scratch operand']
  %s0 = inlined_call_operand.vmem [shape: f32[192,32], index: 0, kind: input, shape index: {}]
  %s1 = inlined_call_operand.vmem [shape: f32[32,96], index: 1, kind: input, shape index: {}]
  %s2 = inlined_call_operand.vmem [shape: f32[32,32], index: 2, kind: input, shape index: {}]
  %s3 = inlined_call_operand.vmem [shape: f32[1,32], index: 3, kind: input, shape index: {}]
  %s4 = inlined_call_operand.vmem [shape: f32[96,96], index: 4, kind: input, shape index: {}]
  %s5 = inlined_call_operand.vmem [shape: f32[192,32], index: 5, kind: output, shape index: {}]
  %s6 = sld [smem:[#allocation0]]
  $region53: #{tpu_custom_call.1} parent=0
    _
  %s8 = ssub.s32 1, %s6
  %s9 = scalar_select 0, %s8, %s6
  loop: start=0, step=1, limit=4
  $region2: #{tpu_custom_call.1} parent=0 // loop_pre_header
    _
  $region3: #{tpu_custom_call.1} parent=0 // loop_header
    %s11 = sphi 0, %s15
    %p12 = scmp.ge.s32.totalorder %s11, 4
    %s21 = sphi 0, %s23
    %s24 = sphi 0, %s21
    %s25 = sphi 0, %s24
    %s41 = sphi 0, %s25
    %s45 = sphi 0, %s45
    %s47 = sphi 0, %s45
    %s48 = sphi 0, %s47
    %s62 = sphi 0, %s48
    %s66 = sphi 0, %s66
    %s68 = sphi 0, %s66
    %s69 = sphi 0, %s68
    %s83 = sphi 0, %s69
    %s87 = sphi 0, %s87
    %s89 = sphi 0, %s87
    %s90 = sphi 0, %s89
    %s104 = sphi 0, %s90
    %s108 = sphi 0, %s108
    %s110 = sphi 0, %s108
    %s111 = sphi 0, %s110
    %s125 = sphi 0, %s111
    %s131 = sphi 0, %s133
    %s134 = sphi 0, %s131
    %s135 = sphi 0, %s134
    %s151 = sphi 0, %s135
  $region4: #{tpu_custom_call.1} parent=0 // loop_header_branch
    %14 = sbr.rel (%p12) target = $region8
  $region5: #{tpu_custom_call.1} parent=0 // loop_body
    %s16 = ssub.s32 %s11, 1
    %s17 = ssub.s32 %s11, 2
    %s18 = sadd.s32 %s11, 1
    %s19 = ssub.s32 %s11, %s18
    %p20 = scmp.eq.s32.totalorder %s19, 0
    %s22 = sadd.s32 %s21, 1
    %s23 = scalar_select %p20, %s21, %s22
    %p26 = pneg %p20
    %p27 = scmp.eq.s32.totalorder %s11, 1
    %p28 = por %p26, %p27
    %p29 = scmp.ne.s32.totalorder %s21, %s24
    %p30 = scmp.eq.s32.totalorder %s11, 0
    %p31 = por %p29, %p30
    %p32 = scmp.ne.s32.totalorder %s21, %s24
    %p33 = scmp.eq.s32.totalorder %s16, 1
    %p34 = por %p32, %p33
    %p35 = scmp.ne.s32.totalorder %s24, %s25
    %p36 = scmp.eq.s32.totalorder %s16, 0
    %p37 = por %p35, %p36
    %p38 = scmp.ne.s32.totalorder %s24, %s25
    %p39 = scmp.eq.s32.totalorder %s17, 1
    %p40 = por %p38, %p39
    %p42 = scmp.ne.s32.totalorder %s25, %s41
    %p43 = scmp.eq.s32.totalorder %s17, 0
    %p44 = por %p42, %p43
    %s46 = sadd.s32 %s45, 1
    %p49 = scmp.eq.s32.totalorder %s11, 1
    %p50 = scmp.ne.s32.totalorder %s45, %s47
    %p51 = scmp.eq.s32.totalorder %s11, 0
    %p52 = por %p50, %p51
    %p53 = scmp.ne.s32.totalorder %s45, %s47
    %p54 = scmp.eq.s32.totalorder %s16, 1
    %p55 = por %p53, %p54
    %p56 = scmp.ne.s32.totalorder %s47, %s48
    %p57 = scmp.eq.s32.totalorder %s16, 0
    %p58 = por %p56, %p57
    %p59 = scmp.ne.s32.totalorder %s47, %s48
    %p60 = scmp.eq.s32.totalorder %s17, 1
    %p61 = por %p59, %p60
    %p63 = scmp.ne.s32.totalorder %s48, %s62
    %p64 = scmp.eq.s32.totalorder %s17, 0
    %p65 = por %p63, %p64
    %s67 = sadd.s32 %s66, 1
    %p70 = scmp.eq.s32.totalorder %s11, 1
    %p71 = scmp.ne.s32.totalorder %s66, %s68
    %p72 = scmp.eq.s32.totalorder %s11, 0
    %p73 = por %p71, %p72
    %p74 = scmp.ne.s32.totalorder %s66, %s68
    %p75 = scmp.eq.s32.totalorder %s16, 1
    %p76 = por %p74, %p75
    %p77 = scmp.ne.s32.totalorder %s68, %s69
    %p78 = scmp.eq.s32.totalorder %s16, 0
    %p79 = por %p77, %p78
    %p80 = scmp.ne.s32.totalorder %s68, %s69
    %p81 = scmp.eq.s32.totalorder %s17, 1
    %p82 = por %p80, %p81
    %p84 = scmp.ne.s32.totalorder %s69, %s83
    %p85 = scmp.eq.s32.totalorder %s17, 0
    %p86 = por %p84, %p85
    %s88 = sadd.s32 %s87, 1
    %p91 = scmp.eq.s32.totalorder %s11, 1
    %p92 = scmp.ne.s32.totalorder %s87, %s89
    %p93 = scmp.eq.s32.totalorder %s11, 0
    %p94 = por %p92, %p93
    %p95 = scmp.ne.s32.totalorder %s87, %s89
    %p96 = scmp.eq.s32.totalorder %s16, 1
    %p97 = por %p95, %p96
    %p98 = scmp.ne.s32.totalorder %s89, %s90
    %p99 = scmp.eq.s32.totalorder %s16, 0
    %p100 = por %p98, %p99
    %p101 = scmp.ne.s32.totalorder %s89, %s90
    %p102 = scmp.eq.s32.totalorder %s17, 1
    %p103 = por %p101, %p102
    %p105 = scmp.ne.s32.totalorder %s90, %s104
    %p106 = scmp.eq.s32.totalorder %s17, 0
    %p107 = por %p105, %p106
    %s109 = sadd.s32 %s108, 1
    %p112 = scmp.eq.s32.totalorder %s11, 1
    %p113 = scmp.ne.s32.totalorder %s108, %s110
    %p114 = scmp.eq.s32.totalorder %s11, 0
    %p115 = por %p113, %p114
    %p116 = scmp.ne.s32.totalorder %s108, %s110
    %p117 = scmp.eq.s32.totalorder %s16, 1
    %p118 = por %p116, %p117
    %p119 = scmp.ne.s32.totalorder %s110, %s111
    %p120 = scmp.eq.s32.totalorder %s16, 0
    %p121 = por %p119, %p120
    %p122 = scmp.ne.s32.totalorder %s110, %s111
    %p123 = scmp.eq.s32.totalorder %s17, 1
    %p124 = por %p122, %p123
    %p126 = scmp.ne.s32.totalorder %s111, %s125
    %p127 = scmp.eq.s32.totalorder %s17, 0
    %p128 = por %p126, %p127
    %s129 = ssub.s32 %s11, %s18
    %p130 = scmp.eq.s32.totalorder %s129, 0
    %s132 = sadd.s32 %s131, 1
    %s133 = scalar_select %p130, %s131, %s132
    %p136 = pneg %p130
    %p137 = scmp.eq.s32.totalorder %s11, 1
    %p138 = por %p136, %p137
    %p139 = scmp.ne.s32.totalorder %s131, %s134
    %p140 = scmp.eq.s32.totalorder %s11, 0
    %p141 = por %p139, %p140
    %p142 = scmp.ne.s32.totalorder %s131, %s134
    %p143 = scmp.eq.s32.totalorder %s16, 1
    %p144 = por %p142, %p143
    %p145 = scmp.ne.s32.totalorder %s134, %s135
    %p146 = scmp.eq.s32.totalorder %s16, 0
    %p147 = por %p145, %p146
    %p148 = scmp.ne.s32.totalorder %s134, %s135
    %p149 = scmp.eq.s32.totalorder %s17, 1
    %p150 = por %p148, %p149
    %p152 = scmp.ne.s32.totalorder %s135, %s151
    %p153 = scmp.eq.s32.totalorder %s17, 0
    %p154 = por %p152, %p153
    %p155 = scmp.le.s32.totalorder 1, %s11
    %p156 = scmp.lt.s32.totalorder %s11, 3
    %p157 = pnand %p155, %p156
    %p158 = pneg %p157
    // Predicated region
    $region9: #{tpu_custom_call.1} parent=5 // pred_check
      _
    $region10: #{tpu_custom_call.1} parent=5 // pred_check_branch
      %160 = sbr.rel (%p157) target = $region12
    $region11: #{tpu_custom_call.1} parent=5 // pred_region
      %s161 = ssub.s32 %s11, 1
      // Predicated region
      $region13: #{tpu_custom_call.1} parent=11 // pred_check
        %p162 = pneg %p58
      $region14: #{tpu_custom_call.1} parent=11 // pred_check_branch
        %164 = sbr.rel (%p162) target = $region16
      $region15: #{tpu_custom_call.1} parent=11 // pred_region
        _
      $region16: #{tpu_custom_call.1} parent=11 // pred_fallthru
        _
      // Predicated region
      $region17: #{tpu_custom_call.1} parent=11 // pred_check
        %p165 = pneg %p79
      $region18: #{tpu_custom_call.1} parent=11 // pred_check_branch
        %167 = sbr.rel (%p165) target = $region20
      $region19: #{tpu_custom_call.1} parent=11 // pred_region
        _
      $region20: #{tpu_custom_call.1} parent=11 // pred_fallthru
        _
      // Predicated region
      $region21: #{tpu_custom_call.1} parent=11 // pred_check
        %p168 = pneg %p100
      $region22: #{tpu_custom_call.1} parent=11 // pred_check_branch
        %170 = sbr.rel (%p168) target = $region24
      $region23: #{tpu_custom_call.1} parent=11 // pred_region
        _
      $region24: #{tpu_custom_call.1} parent=11 // pred_fallthru
        _
      // Predicated region
      $region25: #{tpu_custom_call.1} parent=11 // pred_check
        %p171 = pneg %p121
      $region26: #{tpu_custom_call.1} parent=11 // pred_check_branch
        %173 = sbr.rel (%p171) target = $region28
      $region27: #{tpu_custom_call.1} parent=11 // pred_region
        _
      $region28: #{tpu_custom_call.1} parent=11 // pred_fallthru
        _
    $region12: #{tpu_custom_call.1} parent=5 // pred_fallthru
      _
    %p174 = scmp.lt.s32.totalorder %s11, 2
    // Predicated region
    $region29: #{tpu_custom_call.1} parent=5 // pred_check
      %p175 = pneg %p174
    $region30: #{tpu_custom_call.1} parent=5 // pred_check_branch
      %177 = sbr.rel (%p175) target = $region32
    $region31: #{tpu_custom_call.1} parent=5 // pred_region
      // Predicated region
      $region33: #{tpu_custom_call.1} parent=31 // pred_check
        %p178 = pneg %p31
      $region34: #{tpu_custom_call.1} parent=31 // pred_check_branch
        %180 = sbr.rel (%p178) target = $region36
      $region35: #{tpu_custom_call.1} parent=31 // pred_region
        %s181 = smul.u32 12, %s11
        %p182 = scmp.lt.s32.totalorder %s181, 23
        %s183 = scalar_select %p182, %s181, 23
        %s184 = smul.addr %s183, 8
        %s185 = scalar_lea.vmem %s0, %s184
        %s186 = smul.u32 12, %s11
      $region36: #{tpu_custom_call.1} parent=31 // pred_fallthru
        _
    $region32: #{tpu_custom_call.1} parent=5 // pred_fallthru
      _
    %p187 = scmp.le.s32.totalorder 1, %s11
    %p188 = scmp.lt.s32.totalorder %s11, 3
    %p189 = pnand %p187, %p188
    %p190 = pneg %p189
    // Predicated region
    $region37: #{tpu_custom_call.1} parent=5 // pred_check
      _
    $region38: #{tpu_custom_call.1} parent=5 // pred_check_branch
      %192 = sbr.rel (%p189) target = $region40
    $region39: #{tpu_custom_call.1} parent=5 // pred_region
      %s193 = ssub.s32 %s11, 1
      %s194 = smul.u32 12, %s16
      %p195 = scmp.lt.s32.totalorder %s194, 23
      %s196 = scalar_select %p195, %s194, 23
      %s197 = smul.addr %s196, 8
      %s198 = scalar_lea.vmem %s0, %s197
      %p199 = pneg %p37
      %p200 = pneg %p34
      %p201 = pneg %p58
      %p202 = pneg %p55
      %p203 = pneg %p79
      %p204 = pneg %p76
      %p205 = pneg %p100
      %p206 = pneg %p97
      %p207 = pneg %p121
      %p208 = pneg %p118
      %p209 = pneg %p147
      %p210 = pneg %p144
      %s211 = smul.u32 12, %s16
      %p212 = scmp.lt.s32.totalorder %s211, 23
      %s213 = scalar_select %p212, %s211, 23
      %s214 = smul.addr %s213, 8
      %s215 = scalar_lea.vmem %s5, %s214
      %s216 = smul.u32 12, %s16
      %p217 = scmp.lt.s32.totalorder %s216, 23
      %s218 = scalar_select %p217, %s216, 23
      %s219 = smul.addr %s218, 8
      %s220 = scalar_lea.vmem %s0, %s219
      %s221 = smul.u32 12, %s16
      %s222 = smul.u32 12, %s16
      %p223 = scmp.lt.s32.totalorder %s222, 23
      %s224 = scalar_select %p223, %s222, 23
      %s225 = smul.addr %s224, 8
      %s226 = scalar_lea.vmem %s5, %s225
      %s227 = smul.u32 12, %s16
      %v228 = vld [vmem:[%s220] sm:$0xff]
      %v229 = vld [vmem:[%s220 + $0x8] sm:$0xff]
      %v230 = vld [vmem:[%s220 + $0x10] sm:$0xff]
      %v231 = vld [vmem:[%s220 + $0x18] sm:$0xff]
      %v232 = vld [vmem:[%s220 + $0x20] sm:$0xff]
      %v233 = vld [vmem:[%s220 + $0x28] sm:$0xff]
      %v234 = vld [vmem:[%s220 + $0x30] sm:$0xff]
      %v235 = vld [vmem:[%s220 + $0x38] sm:$0xff]
      %v236 = vld [vmem:[%s220 + $0x40] sm:$0xff]
      %v237 = vld [vmem:[%s220 + $0x48] sm:$0xff]
      %v238 = vld [vmem:[%s220 + $0x50] sm:$0xff]
      %v239 = vld [vmem:[%s220 + $0x58] sm:$0xff]
      %v240 = vld [vmem:[%s4] sm:$0xff]
      %v241 = vld [vmem:[%s4 + $0x8] sm:$0xff]
      %v242 = vld [vmem:[%s4 + $0x10] sm:$0xff]
      %v243 = vld [vmem:[%s4 + $0x18] sm:$0xff]
      %v244 = vld [vmem:[%s4 + $0x20] sm:$0xff]
      %v245 = vld [vmem:[%s4 + $0x28] sm:$0xff]
      %v246 = vld [vmem:[%s4 + $0x30] sm:$0xff]
      %v247 = vld [vmem:[%s4 + $0x38] sm:$0xff]
      %v248 = vld [vmem:[%s4 + $0x40] sm:$0xff]
      %v249 = vld [vmem:[%s4 + $0x48] sm:$0xff]
      %v250 = vld [vmem:[%s4 + $0x50] sm:$0xff]
      %v251 = vld [vmem:[%s4 + $0x58] sm:$0xff]
      %vm252 = vcmp.eq.f32.partialorder %v240, 0.0
      %vm253 = vcmp.eq.f32.partialorder %v241, 0.0
      %vm254 = vcmp.eq.f32.partialorder %v242, 0.0
      %vm255 = vcmp.eq.f32.partialorder %v243, 0.0
      %vm256 = vcmp.eq.f32.partialorder %v244, 0.0
      %vm257 = vcmp.eq.f32.partialorder %v245, 0.0
      %vm258 = vcmp.eq.f32.partialorder %v246, 0.0
      %vm259 = vcmp.eq.f32.partialorder %v247, 0.0
      %vm260 = vcmp.eq.f32.partialorder %v248, 0.0
      %vm261 = vcmp.eq.f32.partialorder %v249, 0.0
      %vm262 = vcmp.eq.f32.partialorder %v250, 0.0
      %vm263 = vcmp.eq.f32.partialorder %v251, 0.0
      %v264 = vld [vmem:[%s1] sm:$0xff]
      %v265 = vld [vmem:[%s1 + $0x8] sm:$0xff]
      %v266 = vld [vmem:[%s1 + $0x10] sm:$0xff]
      %v267 = vld [vmem:[%s1 + $0x18] sm:$0xff]
      %vm268 = vcmask 261120
      %v270 = vsel %vm268, %v228, 0
      %v273 = vsel %vm268, %v229, 0
      %v276 = vsel %vm268, %v230, 0
      %v279 = vsel %vm268, %v231, 0
      %v282 = vsel %vm268, %v232, 0
      %v285 = vsel %vm268, %v233, 0
      %v288 = vsel %vm268, %v234, 0
      %v291 = vsel %vm268, %v235, 0
      %v294 = vsel %vm268, %v236, 0
      %v297 = vsel %vm268, %v237, 0
      %v300 = vsel %vm268, %v238, 0
      %v303 = vsel %vm268, %v239, 0
      %305 = vmatprep.subr.mxu0 0.0
      %306 = vmatpush1.msra.mxu0 0.0
      %307 = vmatprep.subr.mxu0 0.0
      %308 = vmatpush1.msra.mxu0 0.0
      %309 = vmatprep.subr.mxu0 0.0
      %310 = vmatpush1.msra.mxu0 0.0
      %311 = vmatprep.subr.mxu0 0.0
      %312 = vmatpush1.msra.mxu0 0.0
      %313 = vmatprep.subr.mxu0 0.0
      %314 = vmatpush1.msra.mxu0 0.0
      %315 = vmatprep.subr.mxu0 0.0
      %316 = vmatpush1.msra.mxu0 0.0
      %317 = vmatprep.subr.mxu0 0.0
      %318 = vmatpush1.msra.mxu0 0.0
      %319 = vmatprep.subr.mxu0 0.0
      %320 = vmatpush1.msra.mxu0 0.0
      %321 = vmatprep.subr.mxu0 0.0
      %322 = vmatpush1.msra.mxu0 0.0
      %323 = vmatprep.subr.mxu0 0.0
      %324 = vmatpush1.msra.mxu0 0.0
      %325 = vmatprep.subr.mxu0 0.0
      %326 = vmatpush1.msra.mxu0 0.0
      %327 = vmatprep.subr.mxu0 0.0
      %328 = vmatpush1.msra.mxu0 0.0
      %329 = vmatprep.subr.mxu0 0.0
      %330 = vmatpush1.msra.mxu0 %v267
      %331 = vmatprep.subr.mxu0 0.0
      %332 = vmatpush1.msra.mxu0 %v266
      %333 = vmatprep.subr.mxu0 0.0
      %334 = vmatpush1.msra.mxu0 %v265
      %335 = vmatprep.subr.mxu0 0.0
      %336 = vmatpush1.msra.mxu0 %v264
      %337 = vmatprep.subr.mxu0 0.0
      %338 = vmatpush2.msra.mxu0 0.0
      %339 = vmatprep.subr.mxu0 0.0
      %340 = vmatpush2.msra.mxu0 0.0
      %341 = vmatprep.subr.mxu0 0.0
      %342 = vmatpush2.msra.mxu0 0.0
      %343 = vmatprep.subr.mxu0 0.0
      %344 = vmatpush2.msra.mxu0 0.0
      %345 = vmatprep.subr.mxu0 0.0
      %346 = vmatpush2.msra.mxu0 0.0
      %347 = vmatprep.subr.mxu0 0.0
      %348 = vmatpush2.msra.mxu0 0.0
      %349 = vmatprep.subr.mxu0 0.0
      %350 = vmatpush2.msra.mxu0 0.0
      %351 = vmatprep.subr.mxu0 0.0
      %352 = vmatpush2.msra.mxu0 0.0
      %353 = vmatprep.subr.mxu0 0.0
      %354 = vmatpush2.msra.mxu0 0.0
      %355 = vmatprep.subr.mxu0 0.0
      %356 = vmatpush2.msra.mxu0 0.0
      %357 = vmatprep.subr.mxu0 0.0
      %358 = vmatpush2.msra.mxu0 0.0
      %359 = vmatprep.subr.mxu0 0.0
      %360 = vmatpush2.msra.mxu0 0.0
      %361 = vmatprep.subr.mxu0 0.0
      %362 = vmatpush2.msra.mxu0 0.0
      %363 = vmatprep.subr.mxu0 0.0
      %364 = vmatpush2.msra.mxu0 0.0
      %365 = vmatprep.subr.mxu0 0.0
      %366 = vmatpush2.msra.mxu0 0.0
      %367 = vmatprep.subr.mxu0 0.0
      %368 = vmatpush2.msra.mxu0 0.0
      %369 = vmatprep.mubr.f32.mxu0 0.0
      %370 = vmatmul.mubr.f32.gmra.mxu0 %v270
      %v371 = vpop.f32.mrf.mxu0
      %v372 = vadd.f32 0.0, %v371
      %v373 = vpop.f32.mrf.mxu0
      %374 = vmatprep.mubr.f32.mxu0 0.0
      %375 = vmatmul.mubr.f32.gmra.mxu0 %v273
      %v376 = vpop.f32.mrf.mxu0
      %v377 = vadd.f32 0.0, %v376
      %v378 = vpop.f32.mrf.mxu0
      %379 = vmatprep.mubr.f32.mxu0 0.0
      %380 = vmatmul.mubr.f32.gmra.mxu0 %v276
      %v381 = vpop.f32.mrf.mxu0
      %v382 = vadd.f32 0.0, %v381
      %v383 = vpop.f32.mrf.mxu0
      %384 = vmatprep.mubr.f32.mxu0 0.0
      %385 = vmatmul.mubr.f32.gmra.mxu0 %v279
      %v386 = vpop.f32.mrf.mxu0
      %v387 = vadd.f32 0.0, %v386
      %v388 = vpop.f32.mrf.mxu0
      %389 = vmatprep.mubr.f32.mxu0 0.0
      %390 = vmatmul.mubr.f32.gmra.mxu0 %v282
      %v391 = vpop.f32.mrf.mxu0
      %v392 = vadd.f32 0.0, %v391
      %v393 = vpop.f32.mrf.mxu0
      %394 = vmatprep.mubr.f32.mxu0 0.0
      %395 = vmatmul.mubr.f32.gmra.mxu0 %v285
      %v396 = vpop.f32.mrf.mxu0
      %v397 = vadd.f32 0.0, %v396
      %v398 = vpop.f32.mrf.mxu0
      %399 = vmatprep.mubr.f32.mxu0 0.0
      %400 = vmatmul.mubr.f32.gmra.mxu0 %v288
      %v401 = vpop.f32.mrf.mxu0
      %v402 = vadd.f32 0.0, %v401
      %v403 = vpop.f32.mrf.mxu0
      %404 = vmatprep.mubr.f32.mxu0 0.0
      %405 = vmatmul.mubr.f32.gmra.mxu0 %v291
      %v406 = vpop.f32.mrf.mxu0
      %v407 = vadd.f32 0.0, %v406
      %v408 = vpop.f32.mrf.mxu0
      %409 = vmatprep.mubr.f32.mxu0 0.0
      %410 = vmatmul.mubr.f32.gmra.mxu0 %v294
      %v411 = vpop.f32.mrf.mxu0
      %v412 = vadd.f32 0.0, %v411
      %v413 = vpop.f32.mrf.mxu0
      %414 = vmatprep.mubr.f32.mxu0 0.0
      %415 = vmatmul.mubr.f32.gmra.mxu0 %v297
      %v416 = vpop.f32.mrf.mxu0
      %v417 = vadd.f32 0.0, %v416
      %v418 = vpop.f32.mrf.mxu0
      %419 = vmatprep.mubr.f32.mxu0 0.0
      %420 = vmatmul.mubr.f32.gmra.mxu0 %v300
      %v421 = vpop.f32.mrf.mxu0
      %v422 = vadd.f32 0.0, %v421
      %v423 = vpop.f32.mrf.mxu0
      %424 = vmatprep.mubr.f32.mxu0 0.0
      %425 = vmatmul.mubr.f32.gmra.mxu0 %v303
      %v426 = vpop.f32.mrf.mxu0
      %v427 = vadd.f32 0.0, %v426
      %v428 = vpop.f32.mrf.mxu0
      %429 = vdwg.mxu0
      %442 = vrot.lane.b32.xlu0 %v372, 96
      %v443 = vpop.permute.xlu0 %442
      %444 = vrot.lane.b32.xlu0 %v377, 96
      %v445 = vpop.permute.xlu0 %444
      %446 = vrot.lane.b32.xlu0 %v382, 96
      %v447 = vpop.permute.xlu0 %446
      %448 = vrot.lane.b32.xlu0 %v387, 96
      %v449 = vpop.permute.xlu0 %448
      %450 = vrot.lane.b32.xlu0 %v392, 96
      %v451 = vpop.permute.xlu0 %450
      %452 = vrot.lane.b32.xlu0 %v397, 96
      %v453 = vpop.permute.xlu0 %452
      %454 = vrot.lane.b32.xlu0 %v402, 96
      %v455 = vpop.permute.xlu0 %454
      %456 = vrot.lane.b32.xlu0 %v407, 96
      %v457 = vpop.permute.xlu0 %456
      %458 = vrot.lane.b32.xlu0 %v412, 96
      %v459 = vpop.permute.xlu0 %458
      %460 = vrot.lane.b32.xlu0 %v417, 96
      %v461 = vpop.permute.xlu0 %460
      %462 = vrot.lane.b32.xlu0 %v422, 96
      %v463 = vpop.permute.xlu0 %462
      %464 = vrot.lane.b32.xlu0 %v427, 96
      %v465 = vpop.permute.xlu0 %464
      %vm466 = vcmask 64512
      %v467 = vsel %vm466, %v372, 0
      %v469 = vsel %vm466, %v377, 0
      %v471 = vsel %vm466, %v382, 0
      %v473 = vsel %vm466, %v387, 0
      %v475 = vsel %vm466, %v392, 0
      %v477 = vsel %vm466, %v397, 0
      %v479 = vsel %vm466, %v402, 0
      %v481 = vsel %vm466, %v407, 0
      %v483 = vsel %vm466, %v412, 0
      %v485 = vsel %vm466, %v417, 0
      %v487 = vsel %vm466, %v422, 0
      %v489 = vsel %vm466, %v427, 0
      %v491 = vsel %vm466, %v443, 0
      %v493 = vsel %vm466, %v445, 0
      %v495 = vsel %vm466, %v447, 0
      %v497 = vsel %vm466, %v449, 0
      %v499 = vsel %vm466, %v451, 0
      %v501 = vsel %vm466, %v453, 0
      %v503 = vsel %vm466, %v455, 0
      %v505 = vsel %vm466, %v457, 0
      %v507 = vsel %vm466, %v459, 0
      %v509 = vsel %vm466, %v461, 0
      %v511 = vsel %vm466, %v463, 0
      %v513 = vsel %vm466, %v465, 0
      %515 = vmatprep.subr.mxu0 0.0
      %516 = vmatpush1.xpose.msra.mxu0 0.0
      %517 = vmatprep.subr.mxu0 0.0
      %518 = vmatpush1.xpose.msra.mxu0 0.0
      %519 = vmatprep.subr.mxu0 0.0
      %520 = vmatpush1.xpose.msra.mxu0 0.0
      %521 = vmatprep.subr.mxu0 0.0
      %522 = vmatpush1.xpose.msra.mxu0 0.0
      %523 = vmatprep.subr.mxu0 0.0
      %524 = vmatpush1.xpose.msra.mxu0 %v513
      %525 = vmatprep.subr.mxu0 0.0
      %526 = vmatpush1.xpose.msra.mxu0 %v511
      %527 = vmatprep.subr.mxu0 0.0
      %528 = vmatpush1.xpose.msra.mxu0 %v509
      %529 = vmatprep.subr.mxu0 0.0
      %530 = vmatpush1.xpose.msra.mxu0 %v507
      %531 = vmatprep.subr.mxu0 0.0
      %532 = vmatpush1.xpose.msra.mxu0 %v505
      %533 = vmatprep.subr.mxu0 0.0
      %534 = vmatpush1.xpose.msra.mxu0 %v503
      %535 = vmatprep.subr.mxu0 0.0
      %536 = vmatpush1.xpose.msra.mxu0 %v501
      %537 = vmatprep.subr.mxu0 0.0
      %538 = vmatpush1.xpose.msra.mxu0 %v499
      %539 = vmatprep.subr.mxu0 0.0
      %540 = vmatpush1.xpose.msra.mxu0 %v497
      %541 = vmatprep.subr.mxu0 0.0
      %542 = vmatpush1.xpose.msra.mxu0 %v495
      %543 = vmatprep.subr.mxu0 0.0
      %544 = vmatpush1.xpose.msra.mxu0 %v493
      %545 = vmatprep.subr.mxu0 0.0
      %546 = vmatpush1.xpose.msra.mxu0 %v491
      %547 = vmatprep.subr.mxu0 0.0
      %548 = vmatpush2.xpose.msra.mxu0 0.0
      %549 = vmatprep.subr.mxu0 0.0
      %550 = vmatpush2.xpose.msra.mxu0 0.0
      %551 = vmatprep.subr.mxu0 0.0
      %552 = vmatpush2.xpose.msra.mxu0 0.0
      %553 = vmatprep.subr.mxu0 0.0
      %554 = vmatpush2.xpose.msra.mxu0 0.0
      %555 = vmatprep.subr.mxu0 0.0
      %556 = vmatpush2.xpose.msra.mxu0 0.0
      %557 = vmatprep.subr.mxu0 0.0
      %558 = vmatpush2.xpose.msra.mxu0 0.0
      %559 = vmatprep.subr.mxu0 0.0
      %560 = vmatpush2.xpose.msra.mxu0 0.0
      %561 = vmatprep.subr.mxu0 0.0
      %562 = vmatpush2.xpose.msra.mxu0 0.0
      %563 = vmatprep.subr.mxu0 0.0
      %564 = vmatpush2.xpose.msra.mxu0 0.0
      %565 = vmatprep.subr.mxu0 0.0
      %566 = vmatpush2.xpose.msra.mxu0 0.0
      %567 = vmatprep.subr.mxu0 0.0
      %568 = vmatpush2.xpose.msra.mxu0 0.0
      %569 = vmatprep.subr.mxu0 0.0
      %570 = vmatpush2.xpose.msra.mxu0 0.0
      %571 = vmatprep.subr.mxu0 0.0
      %572 = vmatpush2.xpose.msra.mxu0 0.0
      %573 = vmatprep.subr.mxu0 0.0
      %574 = vmatpush2.xpose.msra.mxu0 0.0
      %575 = vmatprep.subr.mxu0 0.0
      %576 = vmatpush2.xpose.msra.mxu0 0.0
      %577 = vmatprep.subr.mxu0 0.0
      %578 = vmatpush2.xpose.msra.mxu0 0.0
      %579 = vmatprep.mubr.f32.mxu0 0.0
      %580 = vmatmul.mubr.f32.gmra.mxu0 %v467
      %v581 = vpop.f32.mrf.mxu0
      %v582 = vadd.f32 0.0, %v581
      %v583 = vpop.f32.mrf.mxu0
      %584 = vmatprep.mubr.f32.mxu0 0.0
      %585 = vmatmul.mubr.f32.gmra.mxu0 %v469
      %v586 = vpop.f32.mrf.mxu0
      %v587 = vadd.f32 0.0, %v586
      %v588 = vpop.f32.mrf.mxu0
      %589 = vmatprep.mubr.f32.mxu0 0.0
      %590 = vmatmul.mubr.f32.gmra.mxu0 %v471
      %v591 = vpop.f32.mrf.mxu0
      %v592 = vadd.f32 0.0, %v591
      %v593 = vpop.f32.mrf.mxu0
      %594 = vmatprep.mubr.f32.mxu0 0.0
      %595 = vmatmul.mubr.f32.gmra.mxu0 %v473
      %v596 = vpop.f32.mrf.mxu0
      %v597 = vadd.f32 0.0, %v596
      %v598 = vpop.f32.mrf.mxu0
      %599 = vmatprep.mubr.f32.mxu0 0.0
      %600 = vmatmul.mubr.f32.gmra.mxu0 %v475
      %v601 = vpop.f32.mrf.mxu0
      %v602 = vadd.f32 0.0, %v601
      %v603 = vpop.f32.mrf.mxu0
      %604 = vmatprep.mubr.f32.mxu0 0.0
      %605 = vmatmul.mubr.f32.gmra.mxu0 %v477
      %v606 = vpop.f32.mrf.mxu0
      %v607 = vadd.f32 0.0, %v606
      %v608 = vpop.f32.mrf.mxu0
      %609 = vmatprep.mubr.f32.mxu0 0.0
      %610 = vmatmul.mubr.f32.gmra.mxu0 %v479
      %v611 = vpop.f32.mrf.mxu0
      %v612 = vadd.f32 0.0, %v611
      %v613 = vpop.f32.mrf.mxu0
      %614 = vmatprep.mubr.f32.mxu0 0.0
      %615 = vmatmul.mubr.f32.gmra.mxu0 %v481
      %v616 = vpop.f32.mrf.mxu0
      %v617 = vadd.f32 0.0, %v616
      %v618 = vpop.f32.mrf.mxu0
      %619 = vmatprep.mubr.f32.mxu0 0.0
      %620 = vmatmul.mubr.f32.gmra.mxu0 %v483
      %v621 = vpop.f32.mrf.mxu0
      %v622 = vadd.f32 0.0, %v621
      %v623 = vpop.f32.mrf.mxu0
      %624 = vmatprep.mubr.f32.mxu0 0.0
      %625 = vmatmul.mubr.f32.gmra.mxu0 %v485
      %v626 = vpop.f32.mrf.mxu0
      %v627 = vadd.f32 0.0, %v626
      %v628 = vpop.f32.mrf.mxu0
      %629 = vmatprep.mubr.f32.mxu0 0.0
      %630 = vmatmul.mubr.f32.gmra.mxu0 %v487
      %v631 = vpop.f32.mrf.mxu0
      %v632 = vadd.f32 0.0, %v631
      %v633 = vpop.f32.mrf.mxu0
      %634 = vmatprep.mubr.f32.mxu0 0.0
      %635 = vmatmul.mubr.f32.gmra.mxu0 %v489
      %v636 = vpop.f32.mrf.mxu0
      %v637 = vadd.f32 0.0, %v636
      %v638 = vpop.f32.mrf.mxu0
      %639 = vdwg.mxu0
      %v640 = vsel %vm252, %v582, %v240
      %v641 = vsel %vm253, %v587, %v241
      %v642 = vsel %vm254, %v592, %v242
      %v643 = vsel %vm255, %v597, %v243
      %v644 = vsel %vm256, %v602, %v244
      %v645 = vsel %vm257, %v607, %v245
      %v646 = vsel %vm258, %v612, %v246
      %v647 = vsel %vm259, %v617, %v247
      %v648 = vsel %vm260, %v622, %v248
      %v649 = vsel %vm261, %v627, %v249
      %v650 = vsel %vm262, %v632, %v250
      %v651 = vsel %vm263, %v637, %v251
      %vm652 = vcmask 785408
      %v653 = vsel %vm652, %v640, -inf
      %654 = vmax.xlane.f32.xlu0 %v653
      %v655 = vpop.xlane.xlu0 %654
      %v656 = vsel %vm652, %v641, -inf
      %657 = vmax.xlane.f32.xlu0 %v656
      %v658 = vpop.xlane.xlu0 %657
      %v659 = vsel %vm652, %v642, -inf
      %660 = vmax.xlane.f32.xlu0 %v659
      %v661 = vpop.xlane.xlu0 %660
      %v662 = vsel %vm652, %v643, -inf
      %663 = vmax.xlane.f32.xlu0 %v662
      %v664 = vpop.xlane.xlu0 %663
      %v665 = vsel %vm652, %v644, -inf
      %666 = vmax.xlane.f32.xlu0 %v665
      %v667 = vpop.xlane.xlu0 %666
      %v668 = vsel %vm652, %v645, -inf
      %669 = vmax.xlane.f32.xlu0 %v668
      %v670 = vpop.xlane.xlu0 %669
      %v671 = vsel %vm652, %v646, -inf
      %672 = vmax.xlane.f32.xlu0 %v671
      %v673 = vpop.xlane.xlu0 %672
      %v674 = vsel %vm652, %v647, -inf
      %675 = vmax.xlane.f32.xlu0 %v674
      %v676 = vpop.xlane.xlu0 %675
      %v677 = vsel %vm652, %v648, -inf
      %678 = vmax.xlane.f32.xlu0 %v677
      %v679 = vpop.xlane.xlu0 %678
      %v680 = vsel %vm652, %v649, -inf
      %681 = vmax.xlane.f32.xlu0 %v680
      %v682 = vpop.xlane.xlu0 %681
      %v683 = vsel %vm652, %v650, -inf
      %684 = vmax.xlane.f32.xlu0 %v683
      %v685 = vpop.xlane.xlu0 %684
      %v686 = vsel %vm652, %v651, -inf
      %687 = vmax.xlane.f32.xlu0 %v686
      %v688 = vpop.xlane.xlu0 %687
      %v689 = vsub.f32 %v640, %v655
      %v690 = vsub.f32 %v641, %v658
      %v691 = vsub.f32 %v642, %v661
      %v692 = vsub.f32 %v643, %v664
      %v693 = vsub.f32 %v644, %v667
      %v694 = vsub.f32 %v645, %v670
      %v695 = vsub.f32 %v646, %v673
      %v696 = vsub.f32 %v647, %v676
      %v697 = vsub.f32 %v648, %v679
      %v698 = vsub.f32 %v649, %v682
      %v699 = vsub.f32 %v650, %v685
      %v700 = vsub.f32 %v651, %v688
      %v701 = vmul.f32 %v689, 1.442695
      %v702 = vpow.pop %v701
      %v703 = vmul.f32 %v690, 1.442695
      %v704 = vpow.pop %v703
      %v705 = vmul.f32 %v691, 1.442695
      %v706 = vpow.pop %v705
      %v707 = vmul.f32 %v692, 1.442695
      %v708 = vpow.pop %v707
      %v709 = vmul.f32 %v693, 1.442695
      %v710 = vpow.pop %v709
      %v711 = vmul.f32 %v694, 1.442695
      %v712 = vpow.pop %v711
      %v713 = vmul.f32 %v695, 1.442695
      %v714 = vpow.pop %v713
      %v715 = vmul.f32 %v696, 1.442695
      %v716 = vpow.pop %v715
      %v717 = vmul.f32 %v697, 1.442695
      %v718 = vpow.pop %v717
      %v719 = vmul.f32 %v698, 1.442695
      %v720 = vpow.pop %v719
      %v721 = vmul.f32 %v699, 1.442695
      %v722 = vpow.pop %v721
      %v723 = vmul.f32 %v700, 1.442695
      %v724 = vpow.pop %v723
      %v725 = vsel %vm652, %v702, 0.0
      %726 = vadd.xlane.f32.xlu0 %v725
      %v727 = vpop.xlane.xlu0 %726
      %v728 = vsel %vm652, %v704, 0.0
      %729 = vadd.xlane.f32.xlu0 %v728
      %v730 = vpop.xlane.xlu0 %729
      %v731 = vsel %vm652, %v706, 0.0
      %732 = vadd.xlane.f32.xlu0 %v731
      %v733 = vpop.xlane.xlu0 %732
      %v734 = vsel %vm652, %v708, 0.0
      %735 = vadd.xlane.f32.xlu0 %v734
      %v736 = vpop.xlane.xlu0 %735
      %v737 = vsel %vm652, %v710, 0.0
      %738 = vadd.xlane.f32.xlu0 %v737
      %v739 = vpop.xlane.xlu0 %738
      %v740 = vsel %vm652, %v712, 0.0
      %741 = vadd.xlane.f32.xlu0 %v740
      %v742 = vpop.xlane.xlu0 %741
      %v743 = vsel %vm652, %v714, 0.0
      %744 = vadd.xlane.f32.xlu0 %v743
      %v745 = vpop.xlane.xlu0 %744
      %v746 = vsel %vm652, %v716, 0.0
      %747 = vadd.xlane.f32.xlu0 %v746
      %v748 = vpop.xlane.xlu0 %747
      %v749 = vsel %vm652, %v718, 0.0
      %750 = vadd.xlane.f32.xlu0 %v749
      %v751 = vpop.xlane.xlu0 %750
      %v752 = vsel %vm652, %v720, 0.0
      %753 = vadd.xlane.f32.xlu0 %v752
      %v754 = vpop.xlane.xlu0 %753
      %v755 = vsel %vm652, %v722, 0.0
      %756 = vadd.xlane.f32.xlu0 %v755
      %v757 = vpop.xlane.xlu0 %756
      %v758 = vsel %vm652, %v724, 0.0
      %759 = vadd.xlane.f32.xlu0 %v758
      %v760 = vpop.xlane.xlu0 %759
      %v761 = vrcp.pop %v727
      %v762 = vrcp.pop %v730
      %v763 = vrcp.pop %v733
      %v764 = vrcp.pop %v736
      %v765 = vrcp.pop %v739
      %v766 = vrcp.pop %v742
      %v767 = vrcp.pop %v745
      %v768 = vrcp.pop %v748
      %v769 = vrcp.pop %v751
      %v770 = vrcp.pop %v754
      %v771 = vrcp.pop %v757
      %v772 = vrcp.pop %v760
      %v773 = vmul.f32 %v702, %v761
      %v774 = vmul.f32 %v704, %v762
      %v775 = vmul.f32 %v706, %v763
      %v776 = vmul.f32 %v708, %v764
      %v777 = vmul.f32 %v710, %v765
      %v778 = vmul.f32 %v712, %v766
      %v779 = vmul.f32 %v714, %v767
      %v780 = vmul.f32 %v716, %v768
      %v781 = vmul.f32 %v718, %v769
      %v782 = vmul.f32 %v720, %v770
      %v783 = vmul.f32 %v722, %v771
      %v784 = vmul.f32 %v724, %v772
      %785 = vrot.lane.b32.xlu0 %v372, 64
      %v786 = vpop.permute.xlu0 %785
      %787 = vrot.lane.b32.xlu0 %v377, 64
      %v788 = vpop.permute.xlu0 %787
      %789 = vrot.lane.b32.xlu0 %v382, 64
      %v790 = vpop.permute.xlu0 %789
      %791 = vrot.lane.b32.xlu0 %v387, 64
      %v792 = vpop.permute.xlu0 %791
      %793 = vrot.lane.b32.xlu0 %v392, 64
      %v794 = vpop.permute.xlu0 %793
      %795 = vrot.lane.b32.xlu0 %v397, 64
      %v796 = vpop.permute.xlu0 %795
      %797 = vrot.lane.b32.xlu0 %v402, 64
      %v798 = vpop.permute.xlu0 %797
      %799 = vrot.lane.b32.xlu0 %v407, 64
      %v800 = vpop.permute.xlu0 %799
      %801 = vrot.lane.b32.xlu0 %v412, 64
      %v802 = vpop.permute.xlu0 %801
      %803 = vrot.lane.b32.xlu0 %v417, 64
      %v804 = vpop.permute.xlu0 %803
      %805 = vrot.lane.b32.xlu0 %v422, 64
      %v806 = vpop.permute.xlu0 %805
      %807 = vrot.lane.b32.xlu0 %v427, 64
      %v808 = vpop.permute.xlu0 %807
      %v822 = vsel %vm652, %v773, 0
      %v825 = vsel %vm652, %v774, 0
      %v828 = vsel %vm652, %v775, 0
      %v831 = vsel %vm652, %v776, 0
      %v834 = vsel %vm652, %v777, 0
      %v837 = vsel %vm652, %v778, 0
      %v840 = vsel %vm652, %v779, 0
      %v843 = vsel %vm652, %v780, 0
      %v846 = vsel %vm652, %v781, 0
      %v849 = vsel %vm652, %v782, 0
      %v852 = vsel %vm652, %v783, 0
      %v855 = vsel %vm652, %v784, 0
      %857 = vmatprep.subr.mxu0 0.0
      %858 = vmatpush1.msra.mxu0 0.0
      %859 = vmatprep.subr.mxu0 0.0
      %860 = vmatpush1.msra.mxu0 0.0
      %861 = vmatprep.subr.mxu0 0.0
      %862 = vmatpush1.msra.mxu0 0.0
      %863 = vmatprep.subr.mxu0 0.0
      %864 = vmatpush1.msra.mxu0 0.0
      %865 = vmatprep.subr.mxu0 0.0
      %866 = vmatpush1.msra.mxu0 %v808
      %867 = vmatprep.subr.mxu0 0.0
      %868 = vmatpush1.msra.mxu0 %v806
      %869 = vmatprep.subr.mxu0 0.0
      %870 = vmatpush1.msra.mxu0 %v804
      %871 = vmatprep.subr.mxu0 0.0
      %872 = vmatpush1.msra.mxu0 %v802
      %873 = vmatprep.subr.mxu0 0.0
      %874 = vmatpush1.msra.mxu0 %v800
      %875 = vmatprep.subr.mxu0 0.0
      %876 = vmatpush1.msra.mxu0 %v798
      %877 = vmatprep.subr.mxu0 0.0
      %878 = vmatpush1.msra.mxu0 %v796
      %879 = vmatprep.subr.mxu0 0.0
      %880 = vmatpush1.msra.mxu0 %v794
      %881 = vmatprep.subr.mxu0 0.0
      %882 = vmatpush1.msra.mxu0 %v792
      %883 = vmatprep.subr.mxu0 0.0
      %884 = vmatpush1.msra.mxu0 %v790
      %885 = vmatprep.subr.mxu0 0.0
      %886 = vmatpush1.msra.mxu0 %v788
      %887 = vmatprep.subr.mxu0 0.0
      %888 = vmatpush1.msra.mxu0 %v786
      %889 = vmatprep.subr.mxu0 0.0
      %890 = vmatpush2.msra.mxu0 0.0
      %891 = vmatprep.subr.mxu0 0.0
      %892 = vmatpush2.msra.mxu0 0.0
      %893 = vmatprep.subr.mxu0 0.0
      %894 = vmatpush2.msra.mxu0 0.0
      %895 = vmatprep.subr.mxu0 0.0
      %896 = vmatpush2.msra.mxu0 0.0
      %897 = vmatprep.subr.mxu0 0.0
      %898 = vmatpush2.msra.mxu0 0.0
      %899 = vmatprep.subr.mxu0 0.0
      %900 = vmatpush2.msra.mxu0 0.0
      %901 = vmatprep.subr.mxu0 0.0
      %902 = vmatpush2.msra.mxu0 0.0
      %903 = vmatprep.subr.mxu0 0.0
      %904 = vmatpush2.msra.mxu0 0.0
      %905 = vmatprep.subr.mxu0 0.0
      %906 = vmatpush2.msra.mxu0 0.0
      %907 = vmatprep.subr.mxu0 0.0
      %908 = vmatpush2.msra.mxu0 0.0
      %909 = vmatprep.subr.mxu0 0.0
      %910 = vmatpush2.msra.mxu0 0.0
      %911 = vmatprep.subr.mxu0 0.0
      %912 = vmatpush2.msra.mxu0 0.0
      %913 = vmatprep.subr.mxu0 0.0
      %914 = vmatpush2.msra.mxu0 0.0
      %915 = vmatprep.subr.mxu0 0.0
      %916 = vmatpush2.msra.mxu0 0.0
      %917 = vmatprep.subr.mxu0 0.0
      %918 = vmatpush2.msra.mxu0 0.0
      %919 = vmatprep.subr.mxu0 0.0
      %920 = vmatpush2.msra.mxu0 0.0
      %921 = vmatprep.mubr.f32.mxu0 0.0
      %922 = vmatmul.mubr.f32.gmra.mxu0 %v822
      %v923 = vpop.f32.mrf.mxu0
      %v924 = vadd.f32 0.0, %v923
      %v925 = vpop.f32.mrf.mxu0
      %926 = vmatprep.mubr.f32.mxu0 0.0
      %927 = vmatmul.mubr.f32.gmra.mxu0 %v825
      %v928 = vpop.f32.mrf.mxu0
      %v929 = vadd.f32 0.0, %v928
      %v930 = vpop.f32.mrf.mxu0
      %931 = vmatprep.mubr.f32.mxu0 0.0
      %932 = vmatmul.mubr.f32.gmra.mxu0 %v828
      %v933 = vpop.f32.mrf.mxu0
      %v934 = vadd.f32 0.0, %v933
      %v935 = vpop.f32.mrf.mxu0
      %936 = vmatprep.mubr.f32.mxu0 0.0
      %937 = vmatmul.mubr.f32.gmra.mxu0 %v831
      %v938 = vpop.f32.mrf.mxu0
      %v939 = vadd.f32 0.0, %v938
      %v940 = vpop.f32.mrf.mxu0
      %941 = vmatprep.mubr.f32.mxu0 0.0
      %942 = vmatmul.mubr.f32.gmra.mxu0 %v834
      %v943 = vpop.f32.mrf.mxu0
      %v944 = vadd.f32 0.0, %v943
      %v945 = vpop.f32.mrf.mxu0
      %946 = vmatprep.mubr.f32.mxu0 0.0
      %947 = vmatmul.mubr.f32.gmra.mxu0 %v837
      %v948 = vpop.f32.mrf.mxu0
      %v949 = vadd.f32 0.0, %v948
      %v950 = vpop.f32.mrf.mxu0
      %951 = vmatprep.mubr.f32.mxu0 0.0
      %952 = vmatmul.mubr.f32.gmra.mxu0 %v840
      %v953 = vpop.f32.mrf.mxu0
      %v954 = vadd.f32 0.0, %v953
      %v955 = vpop.f32.mrf.mxu0
      %956 = vmatprep.mubr.f32.mxu0 0.0
      %957 = vmatmul.mubr.f32.gmra.mxu0 %v843
      %v958 = vpop.f32.mrf.mxu0
      %v959 = vadd.f32 0.0, %v958
      %v960 = vpop.f32.mrf.mxu0
      %961 = vmatprep.mubr.f32.mxu0 0.0
      %962 = vmatmul.mubr.f32.gmra.mxu0 %v846
      %v963 = vpop.f32.mrf.mxu0
      %v964 = vadd.f32 0.0, %v963
      %v965 = vpop.f32.mrf.mxu0
      %966 = vmatprep.mubr.f32.mxu0 0.0
      %967 = vmatmul.mubr.f32.gmra.mxu0 %v849
      %v968 = vpop.f32.mrf.mxu0
      %v969 = vadd.f32 0.0, %v968
      %v970 = vpop.f32.mrf.mxu0
      %971 = vmatprep.mubr.f32.mxu0 0.0
      %972 = vmatmul.mubr.f32.gmra.mxu0 %v852
      %v973 = vpop.f32.mrf.mxu0
      %v974 = vadd.f32 0.0, %v973
      %v975 = vpop.f32.mrf.mxu0
      %976 = vmatprep.mubr.f32.mxu0 0.0
      %977 = vmatmul.mubr.f32.gmra.mxu0 %v855
      %v978 = vpop.f32.mrf.mxu0
      %v979 = vadd.f32 0.0, %v978
      %v980 = vpop.f32.mrf.mxu0
      %981 = vdwg.mxu0
      %982 = vst.msk [vmem:[#allocation2] sm:$0xff] %vm466, %v924
      %983 = vst.msk [vmem:[#allocation2 + $0x8] sm:$0xff] %vm466, %v929
      %984 = vst.msk [vmem:[#allocation2 + $0x10] sm:$0xff] %vm466, %v934
      %985 = vst.msk [vmem:[#allocation2 + $0x18] sm:$0xff] %vm466, %v939
      %986 = vst.msk [vmem:[#allocation2 + $0x20] sm:$0xff] %vm466, %v944
      %987 = vst.msk [vmem:[#allocation2 + $0x28] sm:$0xff] %vm466, %v949
      %988 = vst.msk [vmem:[#allocation2 + $0x30] sm:$0xff] %vm466, %v954
      %989 = vst.msk [vmem:[#allocation2 + $0x38] sm:$0xff] %vm466, %v959
      %990 = vst.msk [vmem:[#allocation2 + $0x40] sm:$0xff] %vm466, %v964
      %991 = vst.msk [vmem:[#allocation2 + $0x48] sm:$0xff] %vm466, %v969
      %992 = vst.msk [vmem:[#allocation2 + $0x50] sm:$0xff] %vm466, %v974
      %993 = vst.msk [vmem:[#allocation2 + $0x58] sm:$0xff] %vm466, %v979
      %994 = vrot.lane.b32.xlu0 %v372, 120
      %v995 = vpop.permute.xlu0 %994
      %996 = vrot.lane.b32.xlu0 %v377, 120
      %v997 = vpop.permute.xlu0 %996
      %998 = vrot.lane.b32.xlu0 %v382, 120
      %v999 = vpop.permute.xlu0 %998
      %1000 = vrot.lane.b32.xlu0 %v387, 120
      %v1001 = vpop.permute.xlu0 %1000
      %1002 = vrot.lane.b32.xlu0 %v392, 120
      %v1003 = vpop.permute.xlu0 %1002
      %1004 = vrot.lane.b32.xlu0 %v397, 120
      %v1005 = vpop.permute.xlu0 %1004
      %1006 = vrot.lane.b32.xlu0 %v402, 120
      %v1007 = vpop.permute.xlu0 %1006
      %1008 = vrot.lane.b32.xlu0 %v407, 120
      %v1009 = vpop.permute.xlu0 %1008
      %1010 = vrot.lane.b32.xlu0 %v412, 120
      %v1011 = vpop.permute.xlu0 %1010
      %1012 = vrot.lane.b32.xlu0 %v417, 120
      %v1013 = vpop.permute.xlu0 %1012
      %1014 = vrot.lane.b32.xlu0 %v422, 120
      %v1015 = vpop.permute.xlu0 %1014
      %1016 = vrot.lane.b32.xlu0 %v427, 120
      %v1017 = vpop.permute.xlu0 %1016
      %1018 = vrot.lane.b32.xlu0 %v372, 88
      %v1019 = vpop.permute.xlu0 %1018
      %1020 = vrot.lane.b32.xlu0 %v377, 88
      %v1021 = vpop.permute.xlu0 %1020
      %1022 = vrot.lane.b32.xlu0 %v382, 88
      %v1023 = vpop.permute.xlu0 %1022
      %1024 = vrot.lane.b32.xlu0 %v387, 88
      %v1025 = vpop.permute.xlu0 %1024
      %1026 = vrot.lane.b32.xlu0 %v392, 88
      %v1027 = vpop.permute.xlu0 %1026
      %1028 = vrot.lane.b32.xlu0 %v397, 88
      %v1029 = vpop.permute.xlu0 %1028
      %1030 = vrot.lane.b32.xlu0 %v402, 88
      %v1031 = vpop.permute.xlu0 %1030
      %1032 = vrot.lane.b32.xlu0 %v407, 88
      %v1033 = vpop.permute.xlu0 %1032
      %1034 = vrot.lane.b32.xlu0 %v412, 88
      %v1035 = vpop.permute.xlu0 %1034
      %1036 = vrot.lane.b32.xlu0 %v417, 88
      %v1037 = vpop.permute.xlu0 %1036
      %1038 = vrot.lane.b32.xlu0 %v422, 88
      %v1039 = vpop.permute.xlu0 %1038
      %1040 = vrot.lane.b32.xlu0 %v427, 88
      %v1041 = vpop.permute.xlu0 %1040
      %v1042 = vsel %vm466, %v995, 0
      %v1044 = vsel %vm466, %v997, 0
      %v1046 = vsel %vm466, %v999, 0
      %v1048 = vsel %vm466, %v1001, 0
      %v1050 = vsel %vm466, %v1003, 0
      %v1052 = vsel %vm466, %v1005, 0
      %v1054 = vsel %vm466, %v1007, 0
      %v1056 = vsel %vm466, %v1009, 0
      %v1058 = vsel %vm466, %v1011, 0
      %v1060 = vsel %vm466, %v1013, 0
      %v1062 = vsel %vm466, %v1015, 0
      %v1064 = vsel %vm466, %v1017, 0
      %v1066 = vsel %vm466, %v1019, 0
      %v1068 = vsel %vm466, %v1021, 0
      %v1070 = vsel %vm466, %v1023, 0
      %v1072 = vsel %vm466, %v1025, 0
      %v1074 = vsel %vm466, %v1027, 0
      %v1076 = vsel %vm466, %v1029, 0
      %v1078 = vsel %vm466, %v1031, 0
      %v1080 = vsel %vm466, %v1033, 0
      %v1082 = vsel %vm466, %v1035, 0
      %v1084 = vsel %vm466, %v1037, 0
      %v1086 = vsel %vm466, %v1039, 0
      %v1088 = vsel %vm466, %v1041, 0
      %1090 = vmatprep.subr.mxu0 0.0
      %1091 = vmatpush1.xpose.msra.mxu0 0.0
      %1092 = vmatprep.subr.mxu0 0.0
      %1093 = vmatpush1.xpose.msra.mxu0 0.0
      %1094 = vmatprep.subr.mxu0 0.0
      %1095 = vmatpush1.xpose.msra.mxu0 0.0
      %1096 = vmatprep.subr.mxu0 0.0
      %1097 = vmatpush1.xpose.msra.mxu0 0.0
      %1098 = vmatprep.subr.mxu0 0.0
      %1099 = vmatpush1.xpose.msra.mxu0 %v1088
      %1100 = vmatprep.subr.mxu0 0.0
      %1101 = vmatpush1.xpose.msra.mxu0 %v1086
      %1102 = vmatprep.subr.mxu0 0.0
      %1103 = vmatpush1.xpose.msra.mxu0 %v1084
      %1104 = vmatprep.subr.mxu0 0.0
      %1105 = vmatpush1.xpose.msra.mxu0 %v1082
      %1106 = vmatprep.subr.mxu0 0.0
      %1107 = vmatpush1.xpose.msra.mxu0 %v1080
      %1108 = vmatprep.subr.mxu0 0.0
      %1109 = vmatpush1.xpose.msra.mxu0 %v1078
      %1110 = vmatprep.subr.mxu0 0.0
      %1111 = vmatpush1.xpose.msra.mxu0 %v1076
      %1112 = vmatprep.subr.mxu0 0.0
      %1113 = vmatpush1.xpose.msra.mxu0 %v1074
      %1114 = vmatprep.subr.mxu0 0.0
      %1115 = vmatpush1.xpose.msra.mxu0 %v1072
      %1116 = vmatprep.subr.mxu0 0.0
      %1117 = vmatpush1.xpose.msra.mxu0 %v1070
      %1118 = vmatprep.subr.mxu0 0.0
      %1119 = vmatpush1.xpose.msra.mxu0 %v1068
      %1120 = vmatprep.subr.mxu0 0.0
      %1121 = vmatpush1.xpose.msra.mxu0 %v1066
      %1122 = vmatprep.subr.mxu0 0.0
      %1123 = vmatpush2.xpose.msra.mxu0 0.0
      %1124 = vmatprep.subr.mxu0 0.0
      %1125 = vmatpush2.xpose.msra.mxu0 0.0
      %1126 = vmatprep.subr.mxu0 0.0
      %1127 = vmatpush2.xpose.msra.mxu0 0.0
      %1128 = vmatprep.subr.mxu0 0.0
      %1129 = vmatpush2.xpose.msra.mxu0 0.0
      %1130 = vmatprep.subr.mxu0 0.0
      %1131 = vmatpush2.xpose.msra.mxu0 0.0
      %1132 = vmatprep.subr.mxu0 0.0
      %1133 = vmatpush2.xpose.msra.mxu0 0.0
      %1134 = vmatprep.subr.mxu0 0.0
      %1135 = vmatpush2.xpose.msra.mxu0 0.0
      %1136 = vmatprep.subr.mxu0 0.0
      %1137 = vmatpush2.xpose.msra.mxu0 0.0
      %1138 = vmatprep.subr.mxu0 0.0
      %1139 = vmatpush2.xpose.msra.mxu0 0.0
      %1140 = vmatprep.subr.mxu0 0.0
      %1141 = vmatpush2.xpose.msra.mxu0 0.0
      %1142 = vmatprep.subr.mxu0 0.0
      %1143 = vmatpush2.xpose.msra.mxu0 0.0
      %1144 = vmatprep.subr.mxu0 0.0
      %1145 = vmatpush2.xpose.msra.mxu0 0.0
      %1146 = vmatprep.subr.mxu0 0.0
      %1147 = vmatpush2.xpose.msra.mxu0 0.0
      %1148 = vmatprep.subr.mxu0 0.0
      %1149 = vmatpush2.xpose.msra.mxu0 0.0
      %1150 = vmatprep.subr.mxu0 0.0
      %1151 = vmatpush2.xpose.msra.mxu0 0.0
      %1152 = vmatprep.subr.mxu0 0.0
      %1153 = vmatpush2.xpose.msra.mxu0 0.0
      %1154 = vmatprep.mubr.f32.mxu0 0.0
      %1155 = vmatmul.mubr.f32.gmra.mxu0 %v1042
      %v1156 = vpop.f32.mrf.mxu0
      %v1157 = vadd.f32 0.0, %v1156
      %v1158 = vpop.f32.mrf.mxu0
      %1159 = vmatprep.mubr.f32.mxu0 0.0
      %1160 = vmatmul.mubr.f32.gmra.mxu0 %v1044
      %v1161 = vpop.f32.mrf.mxu0
      %v1162 = vadd.f32 0.0, %v1161
      %v1163 = vpop.f32.mrf.mxu0
      %1164 = vmatprep.mubr.f32.mxu0 0.0
      %1165 = vmatmul.mubr.f32.gmra.mxu0 %v1046
      %v1166 = vpop.f32.mrf.mxu0
      %v1167 = vadd.f32 0.0, %v1166
      %v1168 = vpop.f32.mrf.mxu0
      %1169 = vmatprep.mubr.f32.mxu0 0.0
      %1170 = vmatmul.mubr.f32.gmra.mxu0 %v1048
      %v1171 = vpop.f32.mrf.mxu0
      %v1172 = vadd.f32 0.0, %v1171
      %v1173 = vpop.f32.mrf.mxu0
      %1174 = vmatprep.mubr.f32.mxu0 0.0
      %1175 = vmatmul.mubr.f32.gmra.mxu0 %v1050
      %v1176 = vpop.f32.mrf.mxu0
      %v1177 = vadd.f32 0.0, %v1176
      %v1178 = vpop.f32.mrf.mxu0
      %1179 = vmatprep.mubr.f32.mxu0 0.0
      %1180 = vmatmul.mubr.f32.gmra.mxu0 %v1052
      %v1181 = vpop.f32.mrf.mxu0
      %v1182 = vadd.f32 0.0, %v1181
      %v1183 = vpop.f32.mrf.mxu0
      %1184 = vmatprep.mubr.f32.mxu0 0.0
      %1185 = vmatmul.mubr.f32.gmra.mxu0 %v1054
      %v1186 = vpop.f32.mrf.mxu0
      %v1187 = vadd.f32 0.0, %v1186
      %v1188 = vpop.f32.mrf.mxu0
      %1189 = vmatprep.mubr.f32.mxu0 0.0
      %1190 = vmatmul.mubr.f32.gmra.mxu0 %v1056
      %v1191 = vpop.f32.mrf.mxu0
      %v1192 = vadd.f32 0.0, %v1191
      %v1193 = vpop.f32.mrf.mxu0
      %1194 = vmatprep.mubr.f32.mxu0 0.0
      %1195 = vmatmul.mubr.f32.gmra.mxu0 %v1058
      %v1196 = vpop.f32.mrf.mxu0
      %v1197 = vadd.f32 0.0, %v1196
      %v1198 = vpop.f32.mrf.mxu0
      %1199 = vmatprep.mubr.f32.mxu0 0.0
      %1200 = vmatmul.mubr.f32.gmra.mxu0 %v1060
      %v1201 = vpop.f32.mrf.mxu0
      %v1202 = vadd.f32 0.0, %v1201
      %v1203 = vpop.f32.mrf.mxu0
      %1204 = vmatprep.mubr.f32.mxu0 0.0
      %1205 = vmatmul.mubr.f32.gmra.mxu0 %v1062
      %v1206 = vpop.f32.mrf.mxu0
      %v1207 = vadd.f32 0.0, %v1206
      %v1208 = vpop.f32.mrf.mxu0
      %1209 = vmatprep.mubr.f32.mxu0 0.0
      %1210 = vmatmul.mubr.f32.gmra.mxu0 %v1064
      %v1211 = vpop.f32.mrf.mxu0
      %v1212 = vadd.f32 0.0, %v1211
      %v1213 = vpop.f32.mrf.mxu0
      %1214 = vdwg.mxu0
      %v1215 = vsel %vm252, %v1157, %v240
      %v1216 = vsel %vm253, %v1162, %v241
      %v1217 = vsel %vm254, %v1167, %v242
      %v1218 = vsel %vm255, %v1172, %v243
      %v1219 = vsel %vm256, %v1177, %v244
      %v1220 = vsel %vm257, %v1182, %v245
      %v1221 = vsel %vm258, %v1187, %v246
      %v1222 = vsel %vm259, %v1192, %v247
      %v1223 = vsel %vm260, %v1197, %v248
      %v1224 = vsel %vm261, %v1202, %v249
      %v1225 = vsel %vm262, %v1207, %v250
      %v1226 = vsel %vm263, %v1212, %v251
      %v1227 = vsel %vm652, %v1215, -inf
      %1228 = vmax.xlane.f32.xlu0 %v1227
      %v1229 = vpop.xlane.xlu0 %1228
      %v1230 = vsel %vm652, %v1216, -inf
      %1231 = vmax.xlane.f32.xlu0 %v1230
      %v1232 = vpop.xlane.xlu0 %1231
      %v1233 = vsel %vm652, %v1217, -inf
      %1234 = vmax.xlane.f32.xlu0 %v1233
      %v1235 = vpop.xlane.xlu0 %1234
      %v1236 = vsel %vm652, %v1218, -inf
      %1237 = vmax.xlane.f32.xlu0 %v1236
      %v1238 = vpop.xlane.xlu0 %1237
      %v1239 = vsel %vm652, %v1219, -inf
      %1240 = vmax.xlane.f32.xlu0 %v1239
      %v1241 = vpop.xlane.xlu0 %1240
      %v1242 = vsel %vm652, %v1220, -inf
      %1243 = vmax.xlane.f32.xlu0 %v1242
      %v1244 = vpop.xlane.xlu0 %1243
      %v1245 = vsel %vm652, %v1221, -inf
      %1246 = vmax.xlane.f32.xlu0 %v1245
      %v1247 = vpop.xlane.xlu0 %1246
      %v1248 = vsel %vm652, %v1222, -inf
      %1249 = vmax.xlane.f32.xlu0 %v1248
      %v1250 = vpop.xlane.xlu0 %1249
      %v1251 = vsel %vm652, %v1223, -inf
      %1252 = vmax.xlane.f32.xlu0 %v1251
      %v1253 = vpop.xlane.xlu0 %1252
      %v1254 = vsel %vm652, %v1224, -inf
      %1255 = vmax.xlane.f32.xlu0 %v1254
      %v1256 = vpop.xlane.xlu0 %1255
      %v1257 = vsel %vm652, %v1225, -inf
      %1258 = vmax.xlane.f32.xlu0 %v1257
      %v1259 = vpop.xlane.xlu0 %1258
      %v1260 = vsel %vm652, %v1226, -inf
      %1261 = vmax.xlane.f32.xlu0 %v1260
      %v1262 = vpop.xlane.xlu0 %1261
      %v1263 = vsub.f32 %v1215, %v1229
      %v1264 = vsub.f32 %v1216, %v1232
      %v1265 = vsub.f32 %v1217, %v1235
      %v1266 = vsub.f32 %v1218, %v1238
      %v1267 = vsub.f32 %v1219, %v1241
      %v1268 = vsub.f32 %v1220, %v1244
      %v1269 = vsub.f32 %v1221, %v1247
      %v1270 = vsub.f32 %v1222, %v1250
      %v1271 = vsub.f32 %v1223, %v1253
      %v1272 = vsub.f32 %v1224, %v1256
      %v1273 = vsub.f32 %v1225, %v1259
      %v1274 = vsub.f32 %v1226, %v1262
      %v1275 = vmul.f32 %v1263, 1.442695
      %v1276 = vpow.pop %v1275
      %v1277 = vmul.f32 %v1264, 1.442695
      %v1278 = vpow.pop %v1277
      %v1279 = vmul.f32 %v1265, 1.442695
      %v1280 = vpow.pop %v1279
      %v1281 = vmul.f32 %v1266, 1.442695
      %v1282 = vpow.pop %v1281
      %v1283 = vmul.f32 %v1267, 1.442695
      %v1284 = vpow.pop %v1283
      %v1285 = vmul.f32 %v1268, 1.442695
      %v1286 = vpow.pop %v1285
      %v1287 = vmul.f32 %v1269, 1.442695
      %v1288 = vpow.pop %v1287
      %v1289 = vmul.f32 %v1270, 1.442695
      %v1290 = vpow.pop %v1289
      %v1291 = vmul.f32 %v1271, 1.442695
      %v1292 = vpow.pop %v1291
      %v1293 = vmul.f32 %v1272, 1.442695
      %v1294 = vpow.pop %v1293
      %v1295 = vmul.f32 %v1273, 1.442695
      %v1296 = vpow.pop %v1295
      %v1297 = vmul.f32 %v1274, 1.442695
      %v1298 = vpow.pop %v1297
      %v1299 = vsel %vm652, %v1276, 0.0
      %1300 = vadd.xlane.f32.xlu0 %v1299
      %v1301 = vpop.xlane.xlu0 %1300
      %v1302 = vsel %vm652, %v1278, 0.0
      %1303 = vadd.xlane.f32.xlu0 %v1302
      %v1304 = vpop.xlane.xlu0 %1303
      %v1305 = vsel %vm652, %v1280, 0.0
      %1306 = vadd.xlane.f32.xlu0 %v1305
      %v1307 = vpop.xlane.xlu0 %1306
      %v1308 = vsel %vm652, %v1282, 0.0
      %1309 = vadd.xlane.f32.xlu0 %v1308
      %v1310 = vpop.xlane.xlu0 %1309
      %v1311 = vsel %vm652, %v1284, 0.0
      %1312 = vadd.xlane.f32.xlu0 %v1311
      %v1313 = vpop.xlane.xlu0 %1312
      %v1314 = vsel %vm652, %v1286, 0.0
      %1315 = vadd.xlane.f32.xlu0 %v1314
      %v1316 = vpop.xlane.xlu0 %1315
      %v1317 = vsel %vm652, %v1288, 0.0
      %1318 = vadd.xlane.f32.xlu0 %v1317
      %v1319 = vpop.xlane.xlu0 %1318
      %v1320 = vsel %vm652, %v1290, 0.0
      %1321 = vadd.xlane.f32.xlu0 %v1320
      %v1322 = vpop.xlane.xlu0 %1321
      %v1323 = vsel %vm652, %v1292, 0.0
      %1324 = vadd.xlane.f32.xlu0 %v1323
      %v1325 = vpop.xlane.xlu0 %1324
      %v1326 = vsel %vm652, %v1294, 0.0
      %1327 = vadd.xlane.f32.xlu0 %v1326
      %v1328 = vpop.xlane.xlu0 %1327
      %v1329 = vsel %vm652, %v1296, 0.0
      %1330 = vadd.xlane.f32.xlu0 %v1329
      %v1331 = vpop.xlane.xlu0 %1330
      %v1332 = vsel %vm652, %v1298, 0.0
      %1333 = vadd.xlane.f32.xlu0 %v1332
      %v1334 = vpop.xlane.xlu0 %1333
      %v1335 = vrcp.pop %v1301
      %v1336 = vrcp.pop %v1304
      %v1337 = vrcp.pop %v1307
      %v1338 = vrcp.pop %v1310
      %v1339 = vrcp.pop %v1313
      %v1340 = vrcp.pop %v1316
      %v1341 = vrcp.pop %v1319
      %v1342 = vrcp.pop %v1322
      %v1343 = vrcp.pop %v1325
      %v1344 = vrcp.pop %v1328
      %v1345 = vrcp.pop %v1331
      %v1346 = vrcp.pop %v1334
      %v1347 = vmul.f32 %v1276, %v1335
      %v1348 = vmul.f32 %v1278, %v1336
      %v1349 = vmul.f32 %v1280, %v1337
      %v1350 = vmul.f32 %v1282, %v1338
      %v1351 = vmul.f32 %v1284, %v1339
      %v1352 = vmul.f32 %v1286, %v1340
      %v1353 = vmul.f32 %v1288, %v1341
      %v1354 = vmul.f32 %v1290, %v1342
      %v1355 = vmul.f32 %v1292, %v1343
      %v1356 = vmul.f32 %v1294, %v1344
      %v1357 = vmul.f32 %v1296, %v1345
      %v1358 = vmul.f32 %v1298, %v1346
      %1359 = vrot.lane.b32.xlu0 %v372, 56
      %v1360 = vpop.permute.xlu0 %1359
      %1361 = vrot.lane.b32.xlu0 %v377, 56
      %v1362 = vpop.permute.xlu0 %1361
      %1363 = vrot.lane.b32.xlu0 %v382, 56
      %v1364 = vpop.permute.xlu0 %1363
      %1365 = vrot.lane.b32.xlu0 %v387, 56
      %v1366 = vpop.permute.xlu0 %1365
      %1367 = vrot.lane.b32.xlu0 %v392, 56
      %v1368 = vpop.permute.xlu0 %1367
      %1369 = vrot.lane.b32.xlu0 %v397, 56
      %v1370 = vpop.permute.xlu0 %1369
      %1371 = vrot.lane.b32.xlu0 %v402, 56
      %v1372 = vpop.permute.xlu0 %1371
      %1373 = vrot.lane.b32.xlu0 %v407, 56
      %v1374 = vpop.permute.xlu0 %1373
      %1375 = vrot.lane.b32.xlu0 %v412, 56
      %v1376 = vpop.permute.xlu0 %1375
      %1377 = vrot.lane.b32.xlu0 %v417, 56
      %v1378 = vpop.permute.xlu0 %1377
      %1379 = vrot.lane.b32.xlu0 %v422, 56
      %v1380 = vpop.permute.xlu0 %1379
      %1381 = vrot.lane.b32.xlu0 %v427, 56
      %v1382 = vpop.permute.xlu0 %1381
      %v1396 = vsel %vm652, %v1347, 0
      %v1399 = vsel %vm652, %v1348, 0
      %v1402 = vsel %vm652, %v1349, 0
      %v1405 = vsel %vm652, %v1350, 0
      %v1408 = vsel %vm652, %v1351, 0
      %v1411 = vsel %vm652, %v1352, 0
      %v1414 = vsel %vm652, %v1353, 0
      %v1417 = vsel %vm652, %v1354, 0
      %v1420 = vsel %vm652, %v1355, 0
      %v1423 = vsel %vm652, %v1356, 0
      %v1426 = vsel %vm652, %v1357, 0
      %v1429 = vsel %vm652, %v1358, 0
      %1431 = vmatprep.subr.mxu0 0.0
      %1432 = vmatpush1.msra.mxu0 0.0
      %1433 = vmatprep.subr.mxu0 0.0
      %1434 = vmatpush1.msra.mxu0 0.0
      %1435 = vmatprep.subr.mxu0 0.0
      %1436 = vmatpush1.msra.mxu0 0.0
      %1437 = vmatprep.subr.mxu0 0.0
      %1438 = vmatpush1.msra.mxu0 0.0
      %1439 = vmatprep.subr.mxu0 0.0
      %1440 = vmatpush1.msra.mxu0 %v1382
      %1441 = vmatprep.subr.mxu0 0.0
      %1442 = vmatpush1.msra.mxu0 %v1380
      %1443 = vmatprep.subr.mxu0 0.0
      %1444 = vmatpush1.msra.mxu0 %v1378
      %1445 = vmatprep.subr.mxu0 0.0
      %1446 = vmatpush1.msra.mxu0 %v1376
      %1447 = vmatprep.subr.mxu0 0.0
      %1448 = vmatpush1.msra.mxu0 %v1374
      %1449 = vmatprep.subr.mxu0 0.0
      %1450 = vmatpush1.msra.mxu0 %v1372
      %1451 = vmatprep.subr.mxu0 0.0
      %1452 = vmatpush1.msra.mxu0 %v1370
      %1453 = vmatprep.subr.mxu0 0.0
      %1454 = vmatpush1.msra.mxu0 %v1368
      %1455 = vmatprep.subr.mxu0 0.0
      %1456 = vmatpush1.msra.mxu0 %v1366
      %1457 = vmatprep.subr.mxu0 0.0
      %1458 = vmatpush1.msra.mxu0 %v1364
      %1459 = vmatprep.subr.mxu0 0.0
      %1460 = vmatpush1.msra.mxu0 %v1362
      %1461 = vmatprep.subr.mxu0 0.0
      %1462 = vmatpush1.msra.mxu0 %v1360
      %1463 = vmatprep.subr.mxu0 0.0
      %1464 = vmatpush2.msra.mxu0 0.0
      %1465 = vmatprep.subr.mxu0 0.0
      %1466 = vmatpush2.msra.mxu0 0.0
      %1467 = vmatprep.subr.mxu0 0.0
      %1468 = vmatpush2.msra.mxu0 0.0
      %1469 = vmatprep.subr.mxu0 0.0
      %1470 = vmatpush2.msra.mxu0 0.0
      %1471 = vmatprep.subr.mxu0 0.0
      %1472 = vmatpush2.msra.mxu0 0.0
      %1473 = vmatprep.subr.mxu0 0.0
      %1474 = vmatpush2.msra.mxu0 0.0
      %1475 = vmatprep.subr.mxu0 0.0
      %1476 = vmatpush2.msra.mxu0 0.0
      %1477 = vmatprep.subr.mxu0 0.0
      %1478 = vmatpush2.msra.mxu0 0.0
      %1479 = vmatprep.subr.mxu0 0.0
      %1480 = vmatpush2.msra.mxu0 0.0
      %1481 = vmatprep.subr.mxu0 0.0
      %1482 = vmatpush2.msra.mxu0 0.0
      %1483 = vmatprep.subr.mxu0 0.0
      %1484 = vmatpush2.msra.mxu0 0.0
      %1485 = vmatprep.subr.mxu0 0.0
      %1486 = vmatpush2.msra.mxu0 0.0
      %1487 = vmatprep.subr.mxu0 0.0
      %1488 = vmatpush2.msra.mxu0 0.0
      %1489 = vmatprep.subr.mxu0 0.0
      %1490 = vmatpush2.msra.mxu0 0.0
      %1491 = vmatprep.subr.mxu0 0.0
      %1492 = vmatpush2.msra.mxu0 0.0
      %1493 = vmatprep.subr.mxu0 0.0
      %1494 = vmatpush2.msra.mxu0 0.0
      %1495 = vmatprep.mubr.f32.mxu0 0.0
      %1496 = vmatmul.mubr.f32.gmra.mxu0 %v1396
      %v1497 = vpop.f32.mrf.mxu0
      %v1498 = vadd.f32 0.0, %v1497
      %v1499 = vpop.f32.mrf.mxu0
      %1500 = vmatprep.mubr.f32.mxu0 0.0
      %1501 = vmatmul.mubr.f32.gmra.mxu0 %v1399
      %v1502 = vpop.f32.mrf.mxu0
      %v1503 = vadd.f32 0.0, %v1502
      %v1504 = vpop.f32.mrf.mxu0
      %1505 = vmatprep.mubr.f32.mxu0 0.0
      %1506 = vmatmul.mubr.f32.gmra.mxu0 %v1402
      %v1507 = vpop.f32.mrf.mxu0
      %v1508 = vadd.f32 0.0, %v1507
      %v1509 = vpop.f32.mrf.mxu0
      %1510 = vmatprep.mubr.f32.mxu0 0.0
      %1511 = vmatmul.mubr.f32.gmra.mxu0 %v1405
      %v1512 = vpop.f32.mrf.mxu0
      %v1513 = vadd.f32 0.0, %v1512
      %v1514 = vpop.f32.mrf.mxu0
      %1515 = vmatprep.mubr.f32.mxu0 0.0
      %1516 = vmatmul.mubr.f32.gmra.mxu0 %v1408
      %v1517 = vpop.f32.mrf.mxu0
      %v1518 = vadd.f32 0.0, %v1517
      %v1519 = vpop.f32.mrf.mxu0
      %1520 = vmatprep.mubr.f32.mxu0 0.0
      %1521 = vmatmul.mubr.f32.gmra.mxu0 %v1411
      %v1522 = vpop.f32.mrf.mxu0
      %v1523 = vadd.f32 0.0, %v1522
      %v1524 = vpop.f32.mrf.mxu0
      %1525 = vmatprep.mubr.f32.mxu0 0.0
      %1526 = vmatmul.mubr.f32.gmra.mxu0 %v1414
      %v1527 = vpop.f32.mrf.mxu0
      %v1528 = vadd.f32 0.0, %v1527
      %v1529 = vpop.f32.mrf.mxu0
      %1530 = vmatprep.mubr.f32.mxu0 0.0
      %1531 = vmatmul.mubr.f32.gmra.mxu0 %v1417
      %v1532 = vpop.f32.mrf.mxu0
      %v1533 = vadd.f32 0.0, %v1532
      %v1534 = vpop.f32.mrf.mxu0
      %1535 = vmatprep.mubr.f32.mxu0 0.0
      %1536 = vmatmul.mubr.f32.gmra.mxu0 %v1420
      %v1537 = vpop.f32.mrf.mxu0
      %v1538 = vadd.f32 0.0, %v1537
      %v1539 = vpop.f32.mrf.mxu0
      %1540 = vmatprep.mubr.f32.mxu0 0.0
      %1541 = vmatmul.mubr.f32.gmra.mxu0 %v1423
      %v1542 = vpop.f32.mrf.mxu0
      %v1543 = vadd.f32 0.0, %v1542
      %v1544 = vpop.f32.mrf.mxu0
      %1545 = vmatprep.mubr.f32.mxu0 0.0
      %1546 = vmatmul.mubr.f32.gmra.mxu0 %v1426
      %v1547 = vpop.f32.mrf.mxu0
      %v1548 = vadd.f32 0.0, %v1547
      %v1549 = vpop.f32.mrf.mxu0
      %1550 = vmatprep.mubr.f32.mxu0 0.0
      %1551 = vmatmul.mubr.f32.gmra.mxu0 %v1429
      %v1552 = vpop.f32.mrf.mxu0
      %v1553 = vadd.f32 0.0, %v1552
      %v1554 = vpop.f32.mrf.mxu0
      %1555 = vdwg.mxu0
      %1568 = vrot.lane.b32.xlu0 %v1498, 8
      %v1569 = vpop.permute.xlu0 %1568
      %1570 = vrot.lane.b32.xlu0 %v1503, 8
      %v1571 = vpop.permute.xlu0 %1570
      %1572 = vrot.lane.b32.xlu0 %v1508, 8
      %v1573 = vpop.permute.xlu0 %1572
      %1574 = vrot.lane.b32.xlu0 %v1513, 8
      %v1575 = vpop.permute.xlu0 %1574
      %1576 = vrot.lane.b32.xlu0 %v1518, 8
      %v1577 = vpop.permute.xlu0 %1576
      %1578 = vrot.lane.b32.xlu0 %v1523, 8
      %v1579 = vpop.permute.xlu0 %1578
      %1580 = vrot.lane.b32.xlu0 %v1528, 8
      %v1581 = vpop.permute.xlu0 %1580
      %1582 = vrot.lane.b32.xlu0 %v1533, 8
      %v1583 = vpop.permute.xlu0 %1582
      %1584 = vrot.lane.b32.xlu0 %v1538, 8
      %v1585 = vpop.permute.xlu0 %1584
      %1586 = vrot.lane.b32.xlu0 %v1543, 8
      %v1587 = vpop.permute.xlu0 %1586
      %1588 = vrot.lane.b32.xlu0 %v1548, 8
      %v1589 = vpop.permute.xlu0 %1588
      %1590 = vrot.lane.b32.xlu0 %v1553, 8
      %v1591 = vpop.permute.xlu0 %1590
      %vm1604 = vcmask 130112
      %1605 = vst.msk [vmem:[#allocation2] sm:$0xff] %vm1604, %v1569
      %1606 = vst.msk [vmem:[#allocation2 + $0x8] sm:$0xff] %vm1604, %v1571
      %1607 = vst.msk [vmem:[#allocation2 + $0x10] sm:$0xff] %vm1604, %v1573
      %1608 = vst.msk [vmem:[#allocation2 + $0x18] sm:$0xff] %vm1604, %v1575
      %1609 = vst.msk [vmem:[#allocation2 + $0x20] sm:$0xff] %vm1604, %v1577
      %1610 = vst.msk [vmem:[#allocation2 + $0x28] sm:$0xff] %vm1604, %v1579
      %1611 = vst.msk [vmem:[#allocation2 + $0x30] sm:$0xff] %vm1604, %v1581
      %1612 = vst.msk [vmem:[#allocation2 + $0x38] sm:$0xff] %vm1604, %v1583
      %1613 = vst.msk [vmem:[#allocation2 + $0x40] sm:$0xff] %vm1604, %v1585
      %1614 = vst.msk [vmem:[#allocation2 + $0x48] sm:$0xff] %vm1604, %v1587
      %1615 = vst.msk [vmem:[#allocation2 + $0x50] sm:$0xff] %vm1604, %v1589
      %1616 = vst.msk [vmem:[#allocation2 + $0x58] sm:$0xff] %vm1604, %v1591
      %1617 = vrot.lane.b32.xlu0 %v372, 112
      %v1618 = vpop.permute.xlu0 %1617
      %1619 = vrot.lane.b32.xlu0 %v377, 112
      %v1620 = vpop.permute.xlu0 %1619
      %1621 = vrot.lane.b32.xlu0 %v382, 112
      %v1622 = vpop.permute.xlu0 %1621
      %1623 = vrot.lane.b32.xlu0 %v387, 112
      %v1624 = vpop.permute.xlu0 %1623
      %1625 = vrot.lane.b32.xlu0 %v392, 112
      %v1626 = vpop.permute.xlu0 %1625
      %1627 = vrot.lane.b32.xlu0 %v397, 112
      %v1628 = vpop.permute.xlu0 %1627
      %1629 = vrot.lane.b32.xlu0 %v402, 112
      %v1630 = vpop.permute.xlu0 %1629
      %1631 = vrot.lane.b32.xlu0 %v407, 112
      %v1632 = vpop.permute.xlu0 %1631
      %1633 = vrot.lane.b32.xlu0 %v412, 112
      %v1634 = vpop.permute.xlu0 %1633
      %1635 = vrot.lane.b32.xlu0 %v417, 112
      %v1636 = vpop.permute.xlu0 %1635
      %1637 = vrot.lane.b32.xlu0 %v422, 112
      %v1638 = vpop.permute.xlu0 %1637
      %1639 = vrot.lane.b32.xlu0 %v427, 112
      %v1640 = vpop.permute.xlu0 %1639
      %1641 = vrot.lane.b32.xlu0 %v372, 80
      %v1642 = vpop.permute.xlu0 %1641
      %1643 = vrot.lane.b32.xlu0 %v377, 80
      %v1644 = vpop.permute.xlu0 %1643
      %1645 = vrot.lane.b32.xlu0 %v382, 80
      %v1646 = vpop.permute.xlu0 %1645
      %1647 = vrot.lane.b32.xlu0 %v387, 80
      %v1648 = vpop.permute.xlu0 %1647
      %1649 = vrot.lane.b32.xlu0 %v392, 80
      %v1650 = vpop.permute.xlu0 %1649
      %1651 = vrot.lane.b32.xlu0 %v397, 80
      %v1652 = vpop.permute.xlu0 %1651
      %1653 = vrot.lane.b32.xlu0 %v402, 80
      %v1654 = vpop.permute.xlu0 %1653
      %1655 = vrot.lane.b32.xlu0 %v407, 80
      %v1656 = vpop.permute.xlu0 %1655
      %1657 = vrot.lane.b32.xlu0 %v412, 80
      %v1658 = vpop.permute.xlu0 %1657
      %1659 = vrot.lane.b32.xlu0 %v417, 80
      %v1660 = vpop.permute.xlu0 %1659
      %1661 = vrot.lane.b32.xlu0 %v422, 80
      %v1662 = vpop.permute.xlu0 %1661
      %1663 = vrot.lane.b32.xlu0 %v427, 80
      %v1664 = vpop.permute.xlu0 %1663
      %v1665 = vsel %vm466, %v1618, 0
      %v1667 = vsel %vm466, %v1620, 0
      %v1669 = vsel %vm466, %v1622, 0
      %v1671 = vsel %vm466, %v1624, 0
      %v1673 = vsel %vm466, %v1626, 0
      %v1675 = vsel %vm466, %v1628, 0
      %v1677 = vsel %vm466, %v1630, 0
      %v1679 = vsel %vm466, %v1632, 0
      %v1681 = vsel %vm466, %v1634, 0
      %v1683 = vsel %vm466, %v1636, 0
      %v1685 = vsel %vm466, %v1638, 0
      %v1687 = vsel %vm466, %v1640, 0
      %v1689 = vsel %vm466, %v1642, 0
      %v1691 = vsel %vm466, %v1644, 0
      %v1693 = vsel %vm466, %v1646, 0
      %v1695 = vsel %vm466, %v1648, 0
      %v1697 = vsel %vm466, %v1650, 0
      %v1699 = vsel %vm466, %v1652, 0
      %v1701 = vsel %vm466, %v1654, 0
      %v1703 = vsel %vm466, %v1656, 0
      %v1705 = vsel %vm466, %v1658, 0
      %v1707 = vsel %vm466, %v1660, 0
      %v1709 = vsel %vm466, %v1662, 0
      %v1711 = vsel %vm466, %v1664, 0
      %1713 = vmatprep.subr.mxu0 0.0
      %1714 = vmatpush1.xpose.msra.mxu0 0.0
      %1715 = vmatprep.subr.mxu0 0.0
      %1716 = vmatpush1.xpose.msra.mxu0 0.0
      %1717 = vmatprep.subr.mxu0 0.0
      %1718 = vmatpush1.xpose.msra.mxu0 0.0
      %1719 = vmatprep.subr.mxu0 0.0
      %1720 = vmatpush1.xpose.msra.mxu0 0.0
      %1721 = vmatprep.subr.mxu0 0.0
      %1722 = vmatpush1.xpose.msra.mxu0 %v1711
      %1723 = vmatprep.subr.mxu0 0.0
      %1724 = vmatpush1.xpose.msra.mxu0 %v1709
      %1725 = vmatprep.subr.mxu0 0.0
      %1726 = vmatpush1.xpose.msra.mxu0 %v1707
      %1727 = vmatprep.subr.mxu0 0.0
      %1728 = vmatpush1.xpose.msra.mxu0 %v1705
      %1729 = vmatprep.subr.mxu0 0.0
      %1730 = vmatpush1.xpose.msra.mxu0 %v1703
      %1731 = vmatprep.subr.mxu0 0.0
      %1732 = vmatpush1.xpose.msra.mxu0 %v1701
      %1733 = vmatprep.subr.mxu0 0.0
      %1734 = vmatpush1.xpose.msra.mxu0 %v1699
      %1735 = vmatprep.subr.mxu0 0.0
      %1736 = vmatpush1.xpose.msra.mxu0 %v1697
      %1737 = vmatprep.subr.mxu0 0.0
      %1738 = vmatpush1.xpose.msra.mxu0 %v1695
      %1739 = vmatprep.subr.mxu0 0.0
      %1740 = vmatpush1.xpose.msra.mxu0 %v1693
      %1741 = vmatprep.subr.mxu0 0.0
      %1742 = vmatpush1.xpose.msra.mxu0 %v1691
      %1743 = vmatprep.subr.mxu0 0.0
      %1744 = vmatpush1.xpose.msra.mxu0 %v1689
      %1745 = vmatprep.subr.mxu0 0.0
      %1746 = vmatpush2.xpose.msra.mxu0 0.0
      %1747 = vmatprep.subr.mxu0 0.0
      %1748 = vmatpush2.xpose.msra.mxu0 0.0
      %1749 = vmatprep.subr.mxu0 0.0
      %1750 = vmatpush2.xpose.msra.mxu0 0.0
      %1751 = vmatprep.subr.mxu0 0.0
      %1752 = vmatpush2.xpose.msra.mxu0 0.0
      %1753 = vmatprep.subr.mxu0 0.0
      %1754 = vmatpush2.xpose.msra.mxu0 0.0
      %1755 = vmatprep.subr.mxu0 0.0
      %1756 = vmatpush2.xpose.msra.mxu0 0.0
      %1757 = vmatprep.subr.mxu0 0.0
      %1758 = vmatpush2.xpose.msra.mxu0 0.0
      %1759 = vmatprep.subr.mxu0 0.0
      %1760 = vmatpush2.xpose.msra.mxu0 0.0
      %1761 = vmatprep.subr.mxu0 0.0
      %1762 = vmatpush2.xpose.msra.mxu0 0.0
      %1763 = vmatprep.subr.mxu0 0.0
      %1764 = vmatpush2.xpose.msra.mxu0 0.0
      %1765 = vmatprep.subr.mxu0 0.0
      %1766 = vmatpush2.xpose.msra.mxu0 0.0
      %1767 = vmatprep.subr.mxu0 0.0
      %1768 = vmatpush2.xpose.msra.mxu0 0.0
      %1769 = vmatprep.subr.mxu0 0.0
      %1770 = vmatpush2.xpose.msra.mxu0 0.0
      %1771 = vmatprep.subr.mxu0 0.0
      %1772 = vmatpush2.xpose.msra.mxu0 0.0
      %1773 = vmatprep.subr.mxu0 0.0
      %1774 = vmatpush2.xpose.msra.mxu0 0.0
      %1775 = vmatprep.subr.mxu0 0.0
      %1776 = vmatpush2.xpose.msra.mxu0 0.0
      %1777 = vmatprep.mubr.f32.mxu0 0.0
      %1778 = vmatmul.mubr.f32.gmra.mxu0 %v1665
      %v1779 = vpop.f32.mrf.mxu0
      %v1780 = vadd.f32 0.0, %v1779
      %v1781 = vpop.f32.mrf.mxu0
      %1782 = vmatprep.mubr.f32.mxu0 0.0
      %1783 = vmatmul.mubr.f32.gmra.mxu0 %v1667
      %v1784 = vpop.f32.mrf.mxu0
      %v1785 = vadd.f32 0.0, %v1784
      %v1786 = vpop.f32.mrf.mxu0
      %1787 = vmatprep.mubr.f32.mxu0 0.0
      %1788 = vmatmul.mubr.f32.gmra.mxu0 %v1669
      %v1789 = vpop.f32.mrf.mxu0
      %v1790 = vadd.f32 0.0, %v1789
      %v1791 = vpop.f32.mrf.mxu0
      %1792 = vmatprep.mubr.f32.mxu0 0.0
      %1793 = vmatmul.mubr.f32.gmra.mxu0 %v1671
      %v1794 = vpop.f32.mrf.mxu0
      %v1795 = vadd.f32 0.0, %v1794
      %v1796 = vpop.f32.mrf.mxu0
      %1797 = vmatprep.mubr.f32.mxu0 0.0
      %1798 = vmatmul.mubr.f32.gmra.mxu0 %v1673
      %v1799 = vpop.f32.mrf.mxu0
      %v1800 = vadd.f32 0.0, %v1799
      %v1801 = vpop.f32.mrf.mxu0
      %1802 = vmatprep.mubr.f32.mxu0 0.0
      %1803 = vmatmul.mubr.f32.gmra.mxu0 %v1675
      %v1804 = vpop.f32.mrf.mxu0
      %v1805 = vadd.f32 0.0, %v1804
      %v1806 = vpop.f32.mrf.mxu0
      %1807 = vmatprep.mubr.f32.mxu0 0.0
      %1808 = vmatmul.mubr.f32.gmra.mxu0 %v1677
      %v1809 = vpop.f32.mrf.mxu0
      %v1810 = vadd.f32 0.0, %v1809
      %v1811 = vpop.f32.mrf.mxu0
      %1812 = vmatprep.mubr.f32.mxu0 0.0
      %1813 = vmatmul.mubr.f32.gmra.mxu0 %v1679
      %v1814 = vpop.f32.mrf.mxu0
      %v1815 = vadd.f32 0.0, %v1814
      %v1816 = vpop.f32.mrf.mxu0
      %1817 = vmatprep.mubr.f32.mxu0 0.0
      %1818 = vmatmul.mubr.f32.gmra.mxu0 %v1681
      %v1819 = vpop.f32.mrf.mxu0
      %v1820 = vadd.f32 0.0, %v1819
      %v1821 = vpop.f32.mrf.mxu0
      %1822 = vmatprep.mubr.f32.mxu0 0.0
      %1823 = vmatmul.mubr.f32.gmra.mxu0 %v1683
      %v1824 = vpop.f32.mrf.mxu0
      %v1825 = vadd.f32 0.0, %v1824
      %v1826 = vpop.f32.mrf.mxu0
      %1827 = vmatprep.mubr.f32.mxu0 0.0
      %1828 = vmatmul.mubr.f32.gmra.mxu0 %v1685
      %v1829 = vpop.f32.mrf.mxu0
      %v1830 = vadd.f32 0.0, %v1829
      %v1831 = vpop.f32.mrf.mxu0
      %1832 = vmatprep.mubr.f32.mxu0 0.0
      %1833 = vmatmul.mubr.f32.gmra.mxu0 %v1687
      %v1834 = vpop.f32.mrf.mxu0
      %v1835 = vadd.f32 0.0, %v1834
      %v1836 = vpop.f32.mrf.mxu0
      %1837 = vdwg.mxu0
      %v1838 = vsel %vm252, %v1780, %v240
      %v1839 = vsel %vm253, %v1785, %v241
      %v1840 = vsel %vm254, %v1790, %v242
      %v1841 = vsel %vm255, %v1795, %v243
      %v1842 = vsel %vm256, %v1800, %v244
      %v1843 = vsel %vm257, %v1805, %v245
      %v1844 = vsel %vm258, %v1810, %v246
      %v1845 = vsel %vm259, %v1815, %v247
      %v1846 = vsel %vm260, %v1820, %v248
      %v1847 = vsel %vm261, %v1825, %v249
      %v1848 = vsel %vm262, %v1830, %v250
      %v1849 = vsel %vm263, %v1835, %v251
      %v1850 = vsel %vm652, %v1838, -inf
      %1851 = vmax.xlane.f32.xlu0 %v1850
      %v1852 = vpop.xlane.xlu0 %1851
      %v1853 = vsel %vm652, %v1839, -inf
      %1854 = vmax.xlane.f32.xlu0 %v1853
      %v1855 = vpop.xlane.xlu0 %1854
      %v1856 = vsel %vm652, %v1840, -inf
      %1857 = vmax.xlane.f32.xlu0 %v1856
      %v1858 = vpop.xlane.xlu0 %1857
      %v1859 = vsel %vm652, %v1841, -inf
      %1860 = vmax.xlane.f32.xlu0 %v1859
      %v1861 = vpop.xlane.xlu0 %1860
      %v1862 = vsel %vm652, %v1842, -inf
      %1863 = vmax.xlane.f32.xlu0 %v1862
      %v1864 = vpop.xlane.xlu0 %1863
      %v1865 = vsel %vm652, %v1843, -inf
      %1866 = vmax.xlane.f32.xlu0 %v1865
      %v1867 = vpop.xlane.xlu0 %1866
      %v1868 = vsel %vm652, %v1844, -inf
      %1869 = vmax.xlane.f32.xlu0 %v1868
      %v1870 = vpop.xlane.xlu0 %1869
      %v1871 = vsel %vm652, %v1845, -inf
      %1872 = vmax.xlane.f32.xlu0 %v1871
      %v1873 = vpop.xlane.xlu0 %1872
      %v1874 = vsel %vm652, %v1846, -inf
      %1875 = vmax.xlane.f32.xlu0 %v1874
      %v1876 = vpop.xlane.xlu0 %1875
      %v1877 = vsel %vm652, %v1847, -inf
      %1878 = vmax.xlane.f32.xlu0 %v1877
      %v1879 = vpop.xlane.xlu0 %1878
      %v1880 = vsel %vm652, %v1848, -inf
      %1881 = vmax.xlane.f32.xlu0 %v1880
      %v1882 = vpop.xlane.xlu0 %1881
      %v1883 = vsel %vm652, %v1849, -inf
      %1884 = vmax.xlane.f32.xlu0 %v1883
      %v1885 = vpop.xlane.xlu0 %1884
      %v1886 = vsub.f32 %v1838, %v1852
      %v1887 = vsub.f32 %v1839, %v1855
      %v1888 = vsub.f32 %v1840, %v1858
      %v1889 = vsub.f32 %v1841, %v1861
      %v1890 = vsub.f32 %v1842, %v1864
      %v1891 = vsub.f32 %v1843, %v1867
      %v1892 = vsub.f32 %v1844, %v1870
      %v1893 = vsub.f32 %v1845, %v1873
      %v1894 = vsub.f32 %v1846, %v1876
      %v1895 = vsub.f32 %v1847, %v1879
      %v1896 = vsub.f32 %v1848, %v1882
      %v1897 = vsub.f32 %v1849, %v1885
      %v1898 = vmul.f32 %v1886, 1.442695
      %v1899 = vpow.pop %v1898
      %v1900 = vmul.f32 %v1887, 1.442695
      %v1901 = vpow.pop %v1900
      %v1902 = vmul.f32 %v1888, 1.442695
      %v1903 = vpow.pop %v1902
      %v1904 = vmul.f32 %v1889, 1.442695
      %v1905 = vpow.pop %v1904
      %v1906 = vmul.f32 %v1890, 1.442695
      %v1907 = vpow.pop %v1906
      %v1908 = vmul.f32 %v1891, 1.442695
      %v1909 = vpow.pop %v1908
      %v1910 = vmul.f32 %v1892, 1.442695
      %v1911 = vpow.pop %v1910
      %v1912 = vmul.f32 %v1893, 1.442695
      %v1913 = vpow.pop %v1912
      %v1914 = vmul.f32 %v1894, 1.442695
      %v1915 = vpow.pop %v1914
      %v1916 = vmul.f32 %v1895, 1.442695
      %v1917 = vpow.pop %v1916
      %v1918 = vmul.f32 %v1896, 1.442695
      %v1919 = vpow.pop %v1918
      %v1920 = vmul.f32 %v1897, 1.442695
      %v1921 = vpow.pop %v1920
      %v1922 = vsel %vm652, %v1899, 0.0
      %1923 = vadd.xlane.f32.xlu0 %v1922
      %v1924 = vpop.xlane.xlu0 %1923
      %v1925 = vsel %vm652, %v1901, 0.0
      %1926 = vadd.xlane.f32.xlu0 %v1925
      %v1927 = vpop.xlane.xlu0 %1926
      %v1928 = vsel %vm652, %v1903, 0.0
      %1929 = vadd.xlane.f32.xlu0 %v1928
      %v1930 = vpop.xlane.xlu0 %1929
      %v1931 = vsel %vm652, %v1905, 0.0
      %1932 = vadd.xlane.f32.xlu0 %v1931
      %v1933 = vpop.xlane.xlu0 %1932
      %v1934 = vsel %vm652, %v1907, 0.0
      %1935 = vadd.xlane.f32.xlu0 %v1934
      %v1936 = vpop.xlane.xlu0 %1935
      %v1937 = vsel %vm652, %v1909, 0.0
      %1938 = vadd.xlane.f32.xlu0 %v1937
      %v1939 = vpop.xlane.xlu0 %1938
      %v1940 = vsel %vm652, %v1911, 0.0
      %1941 = vadd.xlane.f32.xlu0 %v1940
      %v1942 = vpop.xlane.xlu0 %1941
      %v1943 = vsel %vm652, %v1913, 0.0
      %1944 = vadd.xlane.f32.xlu0 %v1943
      %v1945 = vpop.xlane.xlu0 %1944
      %v1946 = vsel %vm652, %v1915, 0.0
      %1947 = vadd.xlane.f32.xlu0 %v1946
      %v1948 = vpop.xlane.xlu0 %1947
      %v1949 = vsel %vm652, %v1917, 0.0
      %1950 = vadd.xlane.f32.xlu0 %v1949
      %v1951 = vpop.xlane.xlu0 %1950
      %v1952 = vsel %vm652, %v1919, 0.0
      %1953 = vadd.xlane.f32.xlu0 %v1952
      %v1954 = vpop.xlane.xlu0 %1953
      %v1955 = vsel %vm652, %v1921, 0.0
      %1956 = vadd.xlane.f32.xlu0 %v1955
      %v1957 = vpop.xlane.xlu0 %1956
      %v1958 = vrcp.pop %v1924
      %v1959 = vrcp.pop %v1927
      %v1960 = vrcp.pop %v1930
      %v1961 = vrcp.pop %v1933
      %v1962 = vrcp.pop %v1936
      %v1963 = vrcp.pop %v1939
      %v1964 = vrcp.pop %v1942
      %v1965 = vrcp.pop %v1945
      %v1966 = vrcp.pop %v1948
      %v1967 = vrcp.pop %v1951
      %v1968 = vrcp.pop %v1954
      %v1969 = vrcp.pop %v1957
      %v1970 = vmul.f32 %v1899, %v1958
      %v1971 = vmul.f32 %v1901, %v1959
      %v1972 = vmul.f32 %v1903, %v1960
      %v1973 = vmul.f32 %v1905, %v1961
      %v1974 = vmul.f32 %v1907, %v1962
      %v1975 = vmul.f32 %v1909, %v1963
      %v1976 = vmul.f32 %v1911, %v1964
      %v1977 = vmul.f32 %v1913, %v1965
      %v1978 = vmul.f32 %v1915, %v1966
      %v1979 = vmul.f32 %v1917, %v1967
      %v1980 = vmul.f32 %v1919, %v1968
      %v1981 = vmul.f32 %v1921, %v1969
      %1982 = vrot.lane.b32.xlu0 %v372, 48
      %v1983 = vpop.permute.xlu0 %1982
      %1984 = vrot.lane.b32.xlu0 %v377, 48
      %v1985 = vpop.permute.xlu0 %1984
      %1986 = vrot.lane.b32.xlu0 %v382, 48
      %v1987 = vpop.permute.xlu0 %1986
      %1988 = vrot.lane.b32.xlu0 %v387, 48
      %v1989 = vpop.permute.xlu0 %1988
      %1990 = vrot.lane.b32.xlu0 %v392, 48
      %v1991 = vpop.permute.xlu0 %1990
      %1992 = vrot.lane.b32.xlu0 %v397, 48
      %v1993 = vpop.permute.xlu0 %1992
      %1994 = vrot.lane.b32.xlu0 %v402, 48
      %v1995 = vpop.permute.xlu0 %1994
      %1996 = vrot.lane.b32.xlu0 %v407, 48
      %v1997 = vpop.permute.xlu0 %1996
      %1998 = vrot.lane.b32.xlu0 %v412, 48
      %v1999 = vpop.permute.xlu0 %1998
      %2000 = vrot.lane.b32.xlu0 %v417, 48
      %v2001 = vpop.permute.xlu0 %2000
      %2002 = vrot.lane.b32.xlu0 %v422, 48
      %v2003 = vpop.permute.xlu0 %2002
      %2004 = vrot.lane.b32.xlu0 %v427, 48
      %v2005 = vpop.permute.xlu0 %2004
      %v2019 = vsel %vm652, %v1970, 0
      %v2022 = vsel %vm652, %v1971, 0
      %v2025 = vsel %vm652, %v1972, 0
      %v2028 = vsel %vm652, %v1973, 0
      %v2031 = vsel %vm652, %v1974, 0
      %v2034 = vsel %vm652, %v1975, 0
      %v2037 = vsel %vm652, %v1976, 0
      %v2040 = vsel %vm652, %v1977, 0
      %v2043 = vsel %vm652, %v1978, 0
      %v2046 = vsel %vm652, %v1979, 0
      %v2049 = vsel %vm652, %v1980, 0
      %v2052 = vsel %vm652, %v1981, 0
      %2054 = vmatprep.subr.mxu0 0.0
      %2055 = vmatpush1.msra.mxu0 0.0
      %2056 = vmatprep.subr.mxu0 0.0
      %2057 = vmatpush1.msra.mxu0 0.0
      %2058 = vmatprep.subr.mxu0 0.0
      %2059 = vmatpush1.msra.mxu0 0.0
      %2060 = vmatprep.subr.mxu0 0.0
      %2061 = vmatpush1.msra.mxu0 0.0
      %2062 = vmatprep.subr.mxu0 0.0
      %2063 = vmatpush1.msra.mxu0 %v2005
      %2064 = vmatprep.subr.mxu0 0.0
      %2065 = vmatpush1.msra.mxu0 %v2003
      %2066 = vmatprep.subr.mxu0 0.0
      %2067 = vmatpush1.msra.mxu0 %v2001
      %2068 = vmatprep.subr.mxu0 0.0
      %2069 = vmatpush1.msra.mxu0 %v1999
      %2070 = vmatprep.subr.mxu0 0.0
      %2071 = vmatpush1.msra.mxu0 %v1997
      %2072 = vmatprep.subr.mxu0 0.0
      %2073 = vmatpush1.msra.mxu0 %v1995
      %2074 = vmatprep.subr.mxu0 0.0
      %2075 = vmatpush1.msra.mxu0 %v1993
      %2076 = vmatprep.subr.mxu0 0.0
      %2077 = vmatpush1.msra.mxu0 %v1991
      %2078 = vmatprep.subr.mxu0 0.0
      %2079 = vmatpush1.msra.mxu0 %v1989
      %2080 = vmatprep.subr.mxu0 0.0
      %2081 = vmatpush1.msra.mxu0 %v1987
      %2082 = vmatprep.subr.mxu0 0.0
      %2083 = vmatpush1.msra.mxu0 %v1985
      %2084 = vmatprep.subr.mxu0 0.0
      %2085 = vmatpush1.msra.mxu0 %v1983
      %2086 = vmatprep.subr.mxu0 0.0
      %2087 = vmatpush2.msra.mxu0 0.0
      %2088 = vmatprep.subr.mxu0 0.0
      %2089 = vmatpush2.msra.mxu0 0.0
      %2090 = vmatprep.subr.mxu0 0.0
      %2091 = vmatpush2.msra.mxu0 0.0
      %2092 = vmatprep.subr.mxu0 0.0
      %2093 = vmatpush2.msra.mxu0 0.0
      %2094 = vmatprep.subr.mxu0 0.0
      %2095 = vmatpush2.msra.mxu0 0.0
      %2096 = vmatprep.subr.mxu0 0.0
      %2097 = vmatpush2.msra.mxu0 0.0
      %2098 = vmatprep.subr.mxu0 0.0
      %2099 = vmatpush2.msra.mxu0 0.0
      %2100 = vmatprep.subr.mxu0 0.0
      %2101 = vmatpush2.msra.mxu0 0.0
      %2102 = vmatprep.subr.mxu0 0.0
      %2103 = vmatpush2.msra.mxu0 0.0
      %2104 = vmatprep.subr.mxu0 0.0
      %2105 = vmatpush2.msra.mxu0 0.0
      %2106 = vmatprep.subr.mxu0 0.0
      %2107 = vmatpush2.msra.mxu0 0.0
      %2108 = vmatprep.subr.mxu0 0.0
      %2109 = vmatpush2.msra.mxu0 0.0
      %2110 = vmatprep.subr.mxu0 0.0
      %2111 = vmatpush2.msra.mxu0 0.0
      %2112 = vmatprep.subr.mxu0 0.0
      %2113 = vmatpush2.msra.mxu0 0.0
      %2114 = vmatprep.subr.mxu0 0.0
      %2115 = vmatpush2.msra.mxu0 0.0
      %2116 = vmatprep.subr.mxu0 0.0
      %2117 = vmatpush2.msra.mxu0 0.0
      %2118 = vmatprep.mubr.f32.mxu0 0.0
      %2119 = vmatmul.mubr.f32.gmra.mxu0 %v2019
      %v2120 = vpop.f32.mrf.mxu0
      %v2121 = vadd.f32 0.0, %v2120
      %v2122 = vpop.f32.mrf.mxu0
      %2123 = vmatprep.mubr.f32.mxu0 0.0
      %2124 = vmatmul.mubr.f32.gmra.mxu0 %v2022
      %v2125 = vpop.f32.mrf.mxu0
      %v2126 = vadd.f32 0.0, %v2125
      %v2127 = vpop.f32.mrf.mxu0
      %2128 = vmatprep.mubr.f32.mxu0 0.0
      %2129 = vmatmul.mubr.f32.gmra.mxu0 %v2025
      %v2130 = vpop.f32.mrf.mxu0
      %v2131 = vadd.f32 0.0, %v2130
      %v2132 = vpop.f32.mrf.mxu0
      %2133 = vmatprep.mubr.f32.mxu0 0.0
      %2134 = vmatmul.mubr.f32.gmra.mxu0 %v2028
      %v2135 = vpop.f32.mrf.mxu0
      %v2136 = vadd.f32 0.0, %v2135
      %v2137 = vpop.f32.mrf.mxu0
      %2138 = vmatprep.mubr.f32.mxu0 0.0
      %2139 = vmatmul.mubr.f32.gmra.mxu0 %v2031
      %v2140 = vpop.f32.mrf.mxu0
      %v2141 = vadd.f32 0.0, %v2140
      %v2142 = vpop.f32.mrf.mxu0
      %2143 = vmatprep.mubr.f32.mxu0 0.0
      %2144 = vmatmul.mubr.f32.gmra.mxu0 %v2034
      %v2145 = vpop.f32.mrf.mxu0
      %v2146 = vadd.f32 0.0, %v2145
      %v2147 = vpop.f32.mrf.mxu0
      %2148 = vmatprep.mubr.f32.mxu0 0.0
      %2149 = vmatmul.mubr.f32.gmra.mxu0 %v2037
      %v2150 = vpop.f32.mrf.mxu0
      %v2151 = vadd.f32 0.0, %v2150
      %v2152 = vpop.f32.mrf.mxu0
      %2153 = vmatprep.mubr.f32.mxu0 0.0
      %2154 = vmatmul.mubr.f32.gmra.mxu0 %v2040
      %v2155 = vpop.f32.mrf.mxu0
      %v2156 = vadd.f32 0.0, %v2155
      %v2157 = vpop.f32.mrf.mxu0
      %2158 = vmatprep.mubr.f32.mxu0 0.0
      %2159 = vmatmul.mubr.f32.gmra.mxu0 %v2043
      %v2160 = vpop.f32.mrf.mxu0
      %v2161 = vadd.f32 0.0, %v2160
      %v2162 = vpop.f32.mrf.mxu0
      %2163 = vmatprep.mubr.f32.mxu0 0.0
      %2164 = vmatmul.mubr.f32.gmra.mxu0 %v2046
      %v2165 = vpop.f32.mrf.mxu0
      %v2166 = vadd.f32 0.0, %v2165
      %v2167 = vpop.f32.mrf.mxu0
      %2168 = vmatprep.mubr.f32.mxu0 0.0
      %2169 = vmatmul.mubr.f32.gmra.mxu0 %v2049
      %v2170 = vpop.f32.mrf.mxu0
      %v2171 = vadd.f32 0.0, %v2170
      %v2172 = vpop.f32.mrf.mxu0
      %2173 = vmatprep.mubr.f32.mxu0 0.0
      %2174 = vmatmul.mubr.f32.gmra.mxu0 %v2052
      %v2175 = vpop.f32.mrf.mxu0
      %v2176 = vadd.f32 0.0, %v2175
      %v2177 = vpop.f32.mrf.mxu0
      %2178 = vdwg.mxu0
      %2191 = vrot.lane.b32.xlu0 %v2121, 16
      %v2192 = vpop.permute.xlu0 %2191
      %2193 = vrot.lane.b32.xlu0 %v2126, 16
      %v2194 = vpop.permute.xlu0 %2193
      %2195 = vrot.lane.b32.xlu0 %v2131, 16
      %v2196 = vpop.permute.xlu0 %2195
      %2197 = vrot.lane.b32.xlu0 %v2136, 16
      %v2198 = vpop.permute.xlu0 %2197
      %2199 = vrot.lane.b32.xlu0 %v2141, 16
      %v2200 = vpop.permute.xlu0 %2199
      %2201 = vrot.lane.b32.xlu0 %v2146, 16
      %v2202 = vpop.permute.xlu0 %2201
      %2203 = vrot.lane.b32.xlu0 %v2151, 16
      %v2204 = vpop.permute.xlu0 %2203
      %2205 = vrot.lane.b32.xlu0 %v2156, 16
      %v2206 = vpop.permute.xlu0 %2205
      %2207 = vrot.lane.b32.xlu0 %v2161, 16
      %v2208 = vpop.permute.xlu0 %2207
      %2209 = vrot.lane.b32.xlu0 %v2166, 16
      %v2210 = vpop.permute.xlu0 %2209
      %2211 = vrot.lane.b32.xlu0 %v2171, 16
      %v2212 = vpop.permute.xlu0 %2211
      %2213 = vrot.lane.b32.xlu0 %v2176, 16
      %v2214 = vpop.permute.xlu0 %2213
      %vm2227 = vcmask 195712
      %2228 = vst.msk [vmem:[#allocation2] sm:$0xff] %vm2227, %v2192
      %2229 = vst.msk [vmem:[#allocation2 + $0x8] sm:$0xff] %vm2227, %v2194
      %2230 = vst.msk [vmem:[#allocation2 + $0x10] sm:$0xff] %vm2227, %v2196
      %2231 = vst.msk [vmem:[#allocation2 + $0x18] sm:$0xff] %vm2227, %v2198
      %2232 = vst.msk [vmem:[#allocation2 + $0x20] sm:$0xff] %vm2227, %v2200
      %2233 = vst.msk [vmem:[#allocation2 + $0x28] sm:$0xff] %vm2227, %v2202
      %2234 = vst.msk [vmem:[#allocation2 + $0x30] sm:$0xff] %vm2227, %v2204
      %2235 = vst.msk [vmem:[#allocation2 + $0x38] sm:$0xff] %vm2227, %v2206
      %2236 = vst.msk [vmem:[#allocation2 + $0x40] sm:$0xff] %vm2227, %v2208
      %2237 = vst.msk [vmem:[#allocation2 + $0x48] sm:$0xff] %vm2227, %v2210
      %2238 = vst.msk [vmem:[#allocation2 + $0x50] sm:$0xff] %vm2227, %v2212
      %2239 = vst.msk [vmem:[#allocation2 + $0x58] sm:$0xff] %vm2227, %v2214
      %2240 = vrot.lane.b32.xlu0 %v372, 104
      %v2241 = vpop.permute.xlu0 %2240
      %2242 = vrot.lane.b32.xlu0 %v377, 104
      %v2243 = vpop.permute.xlu0 %2242
      %2244 = vrot.lane.b32.xlu0 %v382, 104
      %v2245 = vpop.permute.xlu0 %2244
      %2246 = vrot.lane.b32.xlu0 %v387, 104
      %v2247 = vpop.permute.xlu0 %2246
      %2248 = vrot.lane.b32.xlu0 %v392, 104
      %v2249 = vpop.permute.xlu0 %2248
      %2250 = vrot.lane.b32.xlu0 %v397, 104
      %v2251 = vpop.permute.xlu0 %2250
      %2252 = vrot.lane.b32.xlu0 %v402, 104
      %v2253 = vpop.permute.xlu0 %2252
      %2254 = vrot.lane.b32.xlu0 %v407, 104
      %v2255 = vpop.permute.xlu0 %2254
      %2256 = vrot.lane.b32.xlu0 %v412, 104
      %v2257 = vpop.permute.xlu0 %2256
      %2258 = vrot.lane.b32.xlu0 %v417, 104
      %v2259 = vpop.permute.xlu0 %2258
      %2260 = vrot.lane.b32.xlu0 %v422, 104
      %v2261 = vpop.permute.xlu0 %2260
      %2262 = vrot.lane.b32.xlu0 %v427, 104
      %v2263 = vpop.permute.xlu0 %2262
      %2264 = vrot.lane.b32.xlu0 %v372, 72
      %v2265 = vpop.permute.xlu0 %2264
      %2266 = vrot.lane.b32.xlu0 %v377, 72
      %v2267 = vpop.permute.xlu0 %2266
      %2268 = vrot.lane.b32.xlu0 %v382, 72
      %v2269 = vpop.permute.xlu0 %2268
      %2270 = vrot.lane.b32.xlu0 %v387, 72
      %v2271 = vpop.permute.xlu0 %2270
      %2272 = vrot.lane.b32.xlu0 %v392, 72
      %v2273 = vpop.permute.xlu0 %2272
      %2274 = vrot.lane.b32.xlu0 %v397, 72
      %v2275 = vpop.permute.xlu0 %2274
      %2276 = vrot.lane.b32.xlu0 %v402, 72
      %v2277 = vpop.permute.xlu0 %2276
      %2278 = vrot.lane.b32.xlu0 %v407, 72
      %v2279 = vpop.permute.xlu0 %2278
      %2280 = vrot.lane.b32.xlu0 %v412, 72
      %v2281 = vpop.permute.xlu0 %2280
      %2282 = vrot.lane.b32.xlu0 %v417, 72
      %v2283 = vpop.permute.xlu0 %2282
      %2284 = vrot.lane.b32.xlu0 %v422, 72
      %v2285 = vpop.permute.xlu0 %2284
      %2286 = vrot.lane.b32.xlu0 %v427, 72
      %v2287 = vpop.permute.xlu0 %2286
      %v2288 = vsel %vm466, %v2241, 0
      %v2290 = vsel %vm466, %v2243, 0
      %v2292 = vsel %vm466, %v2245, 0
      %v2294 = vsel %vm466, %v2247, 0
      %v2296 = vsel %vm466, %v2249, 0
      %v2298 = vsel %vm466, %v2251, 0
      %v2300 = vsel %vm466, %v2253, 0
      %v2302 = vsel %vm466, %v2255, 0
      %v2304 = vsel %vm466, %v2257, 0
      %v2306 = vsel %vm466, %v2259, 0
      %v2308 = vsel %vm466, %v2261, 0
      %v2310 = vsel %vm466, %v2263, 0
      %v2312 = vsel %vm466, %v2265, 0
      %v2314 = vsel %vm466, %v2267, 0
      %v2316 = vsel %vm466, %v2269, 0
      %v2318 = vsel %vm466, %v2271, 0
      %v2320 = vsel %vm466, %v2273, 0
      %v2322 = vsel %vm466, %v2275, 0
      %v2324 = vsel %vm466, %v2277, 0
      %v2326 = vsel %vm466, %v2279, 0
      %v2328 = vsel %vm466, %v2281, 0
      %v2330 = vsel %vm466, %v2283, 0
      %v2332 = vsel %vm466, %v2285, 0
      %v2334 = vsel %vm466, %v2287, 0
      %2336 = vmatprep.subr.mxu0 0.0
      %2337 = vmatpush1.xpose.msra.mxu0 0.0
      %2338 = vmatprep.subr.mxu0 0.0
      %2339 = vmatpush1.xpose.msra.mxu0 0.0
      %2340 = vmatprep.subr.mxu0 0.0
      %2341 = vmatpush1.xpose.msra.mxu0 0.0
      %2342 = vmatprep.subr.mxu0 0.0
      %2343 = vmatpush1.xpose.msra.mxu0 0.0
      %2344 = vmatprep.subr.mxu0 0.0
      %2345 = vmatpush1.xpose.msra.mxu0 %v2334
      %2346 = vmatprep.subr.mxu0 0.0
      %2347 = vmatpush1.xpose.msra.mxu0 %v2332
      %2348 = vmatprep.subr.mxu0 0.0
      %2349 = vmatpush1.xpose.msra.mxu0 %v2330
      %2350 = vmatprep.subr.mxu0 0.0
      %2351 = vmatpush1.xpose.msra.mxu0 %v2328
      %2352 = vmatprep.subr.mxu0 0.0
      %2353 = vmatpush1.xpose.msra.mxu0 %v2326
      %2354 = vmatprep.subr.mxu0 0.0
      %2355 = vmatpush1.xpose.msra.mxu0 %v2324
      %2356 = vmatprep.subr.mxu0 0.0
      %2357 = vmatpush1.xpose.msra.mxu0 %v2322
      %2358 = vmatprep.subr.mxu0 0.0
      %2359 = vmatpush1.xpose.msra.mxu0 %v2320
      %2360 = vmatprep.subr.mxu0 0.0
      %2361 = vmatpush1.xpose.msra.mxu0 %v2318
      %2362 = vmatprep.subr.mxu0 0.0
      %2363 = vmatpush1.xpose.msra.mxu0 %v2316
      %2364 = vmatprep.subr.mxu0 0.0
      %2365 = vmatpush1.xpose.msra.mxu0 %v2314
      %2366 = vmatprep.subr.mxu0 0.0
      %2367 = vmatpush1.xpose.msra.mxu0 %v2312
      %2368 = vmatprep.subr.mxu0 0.0
      %2369 = vmatpush2.xpose.msra.mxu0 0.0
      %2370 = vmatprep.subr.mxu0 0.0
      %2371 = vmatpush2.xpose.msra.mxu0 0.0
      %2372 = vmatprep.subr.mxu0 0.0
      %2373 = vmatpush2.xpose.msra.mxu0 0.0
      %2374 = vmatprep.subr.mxu0 0.0
      %2375 = vmatpush2.xpose.msra.mxu0 0.0
      %2376 = vmatprep.subr.mxu0 0.0
      %2377 = vmatpush2.xpose.msra.mxu0 0.0
      %2378 = vmatprep.subr.mxu0 0.0
      %2379 = vmatpush2.xpose.msra.mxu0 0.0
      %2380 = vmatprep.subr.mxu0 0.0
      %2381 = vmatpush2.xpose.msra.mxu0 0.0
      %2382 = vmatprep.subr.mxu0 0.0
      %2383 = vmatpush2.xpose.msra.mxu0 0.0
      %2384 = vmatprep.subr.mxu0 0.0
      %2385 = vmatpush2.xpose.msra.mxu0 0.0
      %2386 = vmatprep.subr.mxu0 0.0
      %2387 = vmatpush2.xpose.msra.mxu0 0.0
      %2388 = vmatprep.subr.mxu0 0.0
      %2389 = vmatpush2.xpose.msra.mxu0 0.0
      %2390 = vmatprep.subr.mxu0 0.0
      %2391 = vmatpush2.xpose.msra.mxu0 0.0
      %2392 = vmatprep.subr.mxu0 0.0
      %2393 = vmatpush2.xpose.msra.mxu0 0.0
      %2394 = vmatprep.subr.mxu0 0.0
      %2395 = vmatpush2.xpose.msra.mxu0 0.0
      %2396 = vmatprep.subr.mxu0 0.0
      %2397 = vmatpush2.xpose.msra.mxu0 0.0
      %2398 = vmatprep.subr.mxu0 0.0
      %2399 = vmatpush2.xpose.msra.mxu0 0.0
      %2400 = vmatprep.mubr.f32.mxu0 0.0
      %2401 = vmatmul.mubr.f32.gmra.mxu0 %v2288
      %v2402 = vpop.f32.mrf.mxu0
      %v2403 = vadd.f32 0.0, %v2402
      %v2404 = vpop.f32.mrf.mxu0
      %2405 = vmatprep.mubr.f32.mxu0 0.0
      %2406 = vmatmul.mubr.f32.gmra.mxu0 %v2290
      %v2407 = vpop.f32.mrf.mxu0
      %v2408 = vadd.f32 0.0, %v2407
      %v2409 = vpop.f32.mrf.mxu0
      %2410 = vmatprep.mubr.f32.mxu0 0.0
      %2411 = vmatmul.mubr.f32.gmra.mxu0 %v2292
      %v2412 = vpop.f32.mrf.mxu0
      %v2413 = vadd.f32 0.0, %v2412
      %v2414 = vpop.f32.mrf.mxu0
      %2415 = vmatprep.mubr.f32.mxu0 0.0
      %2416 = vmatmul.mubr.f32.gmra.mxu0 %v2294
      %v2417 = vpop.f32.mrf.mxu0
      %v2418 = vadd.f32 0.0, %v2417
      %v2419 = vpop.f32.mrf.mxu0
      %2420 = vmatprep.mubr.f32.mxu0 0.0
      %2421 = vmatmul.mubr.f32.gmra.mxu0 %v2296
      %v2422 = vpop.f32.mrf.mxu0
      %v2423 = vadd.f32 0.0, %v2422
      %v2424 = vpop.f32.mrf.mxu0
      %2425 = vmatprep.mubr.f32.mxu0 0.0
      %2426 = vmatmul.mubr.f32.gmra.mxu0 %v2298
      %v2427 = vpop.f32.mrf.mxu0
      %v2428 = vadd.f32 0.0, %v2427
      %v2429 = vpop.f32.mrf.mxu0
      %2430 = vmatprep.mubr.f32.mxu0 0.0
      %2431 = vmatmul.mubr.f32.gmra.mxu0 %v2300
      %v2432 = vpop.f32.mrf.mxu0
      %v2433 = vadd.f32 0.0, %v2432
      %v2434 = vpop.f32.mrf.mxu0
      %2435 = vmatprep.mubr.f32.mxu0 0.0
      %2436 = vmatmul.mubr.f32.gmra.mxu0 %v2302
      %v2437 = vpop.f32.mrf.mxu0
      %v2438 = vadd.f32 0.0, %v2437
      %v2439 = vpop.f32.mrf.mxu0
      %2440 = vmatprep.mubr.f32.mxu0 0.0
      %2441 = vmatmul.mubr.f32.gmra.mxu0 %v2304
      %v2442 = vpop.f32.mrf.mxu0
      %v2443 = vadd.f32 0.0, %v2442
      %v2444 = vpop.f32.mrf.mxu0
      %2445 = vmatprep.mubr.f32.mxu0 0.0
      %2446 = vmatmul.mubr.f32.gmra.mxu0 %v2306
      %v2447 = vpop.f32.mrf.mxu0
      %v2448 = vadd.f32 0.0, %v2447
      %v2449 = vpop.f32.mrf.mxu0
      %2450 = vmatprep.mubr.f32.mxu0 0.0
      %2451 = vmatmul.mubr.f32.gmra.mxu0 %v2308
      %v2452 = vpop.f32.mrf.mxu0
      %v2453 = vadd.f32 0.0, %v2452
      %v2454 = vpop.f32.mrf.mxu0
      %2455 = vmatprep.mubr.f32.mxu0 0.0
      %2456 = vmatmul.mubr.f32.gmra.mxu0 %v2310
      %v2457 = vpop.f32.mrf.mxu0
      %v2458 = vadd.f32 0.0, %v2457
      %v2459 = vpop.f32.mrf.mxu0
      %2460 = vdwg.mxu0
      %v2461 = vsel %vm252, %v2403, %v240
      %v2462 = vsel %vm253, %v2408, %v241
      %v2463 = vsel %vm254, %v2413, %v242
      %v2464 = vsel %vm255, %v2418, %v243
      %v2465 = vsel %vm256, %v2423, %v244
      %v2466 = vsel %vm257, %v2428, %v245
      %v2467 = vsel %vm258, %v2433, %v246
      %v2468 = vsel %vm259, %v2438, %v247
      %v2469 = vsel %vm260, %v2443, %v248
      %v2470 = vsel %vm261, %v2448, %v249
      %v2471 = vsel %vm262, %v2453, %v250
      %v2472 = vsel %vm263, %v2458, %v251
      %v2473 = vsel %vm652, %v2461, -inf
      %2474 = vmax.xlane.f32.xlu0 %v2473
      %v2475 = vpop.xlane.xlu0 %2474
      %v2476 = vsel %vm652, %v2462, -inf
      %2477 = vmax.xlane.f32.xlu0 %v2476
      %v2478 = vpop.xlane.xlu0 %2477
      %v2479 = vsel %vm652, %v2463, -inf
      %2480 = vmax.xlane.f32.xlu0 %v2479
      %v2481 = vpop.xlane.xlu0 %2480
      %v2482 = vsel %vm652, %v2464, -inf
      %2483 = vmax.xlane.f32.xlu0 %v2482
      %v2484 = vpop.xlane.xlu0 %2483
      %v2485 = vsel %vm652, %v2465, -inf
      %2486 = vmax.xlane.f32.xlu0 %v2485
      %v2487 = vpop.xlane.xlu0 %2486
      %v2488 = vsel %vm652, %v2466, -inf
      %2489 = vmax.xlane.f32.xlu0 %v2488
      %v2490 = vpop.xlane.xlu0 %2489
      %v2491 = vsel %vm652, %v2467, -inf
      %2492 = vmax.xlane.f32.xlu0 %v2491
      %v2493 = vpop.xlane.xlu0 %2492
      %v2494 = vsel %vm652, %v2468, -inf
      %2495 = vmax.xlane.f32.xlu0 %v2494
      %v2496 = vpop.xlane.xlu0 %2495
      %v2497 = vsel %vm652, %v2469, -inf
      %2498 = vmax.xlane.f32.xlu0 %v2497
      %v2499 = vpop.xlane.xlu0 %2498
      %v2500 = vsel %vm652, %v2470, -inf
      %2501 = vmax.xlane.f32.xlu0 %v2500
      %v2502 = vpop.xlane.xlu0 %2501
      %v2503 = vsel %vm652, %v2471, -inf
      %2504 = vmax.xlane.f32.xlu0 %v2503
      %v2505 = vpop.xlane.xlu0 %2504
      %v2506 = vsel %vm652, %v2472, -inf
      %2507 = vmax.xlane.f32.xlu0 %v2506
      %v2508 = vpop.xlane.xlu0 %2507
      %v2509 = vsub.f32 %v2461, %v2475
      %v2510 = vsub.f32 %v2462, %v2478
      %v2511 = vsub.f32 %v2463, %v2481
      %v2512 = vsub.f32 %v2464, %v2484
      %v2513 = vsub.f32 %v2465, %v2487
      %v2514 = vsub.f32 %v2466, %v2490
      %v2515 = vsub.f32 %v2467, %v2493
      %v2516 = vsub.f32 %v2468, %v2496
      %v2517 = vsub.f32 %v2469, %v2499
      %v2518 = vsub.f32 %v2470, %v2502
      %v2519 = vsub.f32 %v2471, %v2505
      %v2520 = vsub.f32 %v2472, %v2508
      %v2521 = vmul.f32 %v2509, 1.442695
      %v2522 = vpow.pop %v2521
      %v2523 = vmul.f32 %v2510, 1.442695
      %v2524 = vpow.pop %v2523
      %v2525 = vmul.f32 %v2511, 1.442695
      %v2526 = vpow.pop %v2525
      %v2527 = vmul.f32 %v2512, 1.442695
      %v2528 = vpow.pop %v2527
      %v2529 = vmul.f32 %v2513, 1.442695
      %v2530 = vpow.pop %v2529
      %v2531 = vmul.f32 %v2514, 1.442695
      %v2532 = vpow.pop %v2531
      %v2533 = vmul.f32 %v2515, 1.442695
      %v2534 = vpow.pop %v2533
      %v2535 = vmul.f32 %v2516, 1.442695
      %v2536 = vpow.pop %v2535
      %v2537 = vmul.f32 %v2517, 1.442695
      %v2538 = vpow.pop %v2537
      %v2539 = vmul.f32 %v2518, 1.442695
      %v2540 = vpow.pop %v2539
      %v2541 = vmul.f32 %v2519, 1.442695
      %v2542 = vpow.pop %v2541
      %v2543 = vmul.f32 %v2520, 1.442695
      %v2544 = vpow.pop %v2543
      %v2545 = vsel %vm652, %v2522, 0.0
      %2546 = vadd.xlane.f32.xlu0 %v2545
      %v2547 = vpop.xlane.xlu0 %2546
      %v2548 = vsel %vm652, %v2524, 0.0
      %2549 = vadd.xlane.f32.xlu0 %v2548
      %v2550 = vpop.xlane.xlu0 %2549
      %v2551 = vsel %vm652, %v2526, 0.0
      %2552 = vadd.xlane.f32.xlu0 %v2551
      %v2553 = vpop.xlane.xlu0 %2552
      %v2554 = vsel %vm652, %v2528, 0.0
      %2555 = vadd.xlane.f32.xlu0 %v2554
      %v2556 = vpop.xlane.xlu0 %2555
      %v2557 = vsel %vm652, %v2530, 0.0
      %2558 = vadd.xlane.f32.xlu0 %v2557
      %v2559 = vpop.xlane.xlu0 %2558
      %v2560 = vsel %vm652, %v2532, 0.0
      %2561 = vadd.xlane.f32.xlu0 %v2560
      %v2562 = vpop.xlane.xlu0 %2561
      %v2563 = vsel %vm652, %v2534, 0.0
      %2564 = vadd.xlane.f32.xlu0 %v2563
      %v2565 = vpop.xlane.xlu0 %2564
      %v2566 = vsel %vm652, %v2536, 0.0
      %2567 = vadd.xlane.f32.xlu0 %v2566
      %v2568 = vpop.xlane.xlu0 %2567
      %v2569 = vsel %vm652, %v2538, 0.0
      %2570 = vadd.xlane.f32.xlu0 %v2569
      %v2571 = vpop.xlane.xlu0 %2570
      %v2572 = vsel %vm652, %v2540, 0.0
      %2573 = vadd.xlane.f32.xlu0 %v2572
      %v2574 = vpop.xlane.xlu0 %2573
      %v2575 = vsel %vm652, %v2542, 0.0
      %2576 = vadd.xlane.f32.xlu0 %v2575
      %v2577 = vpop.xlane.xlu0 %2576
      %v2578 = vsel %vm652, %v2544, 0.0
      %2579 = vadd.xlane.f32.xlu0 %v2578
      %v2580 = vpop.xlane.xlu0 %2579
      %v2581 = vrcp.pop %v2547
      %v2582 = vrcp.pop %v2550
      %v2583 = vrcp.pop %v2553
      %v2584 = vrcp.pop %v2556
      %v2585 = vrcp.pop %v2559
      %v2586 = vrcp.pop %v2562
      %v2587 = vrcp.pop %v2565
      %v2588 = vrcp.pop %v2568
      %v2589 = vrcp.pop %v2571
      %v2590 = vrcp.pop %v2574
      %v2591 = vrcp.pop %v2577
      %v2592 = vrcp.pop %v2580
      %v2593 = vmul.f32 %v2522, %v2581
      %v2594 = vmul.f32 %v2524, %v2582
      %v2595 = vmul.f32 %v2526, %v2583
      %v2596 = vmul.f32 %v2528, %v2584
      %v2597 = vmul.f32 %v2530, %v2585
      %v2598 = vmul.f32 %v2532, %v2586
      %v2599 = vmul.f32 %v2534, %v2587
      %v2600 = vmul.f32 %v2536, %v2588
      %v2601 = vmul.f32 %v2538, %v2589
      %v2602 = vmul.f32 %v2540, %v2590
      %v2603 = vmul.f32 %v2542, %v2591
      %v2604 = vmul.f32 %v2544, %v2592
      %2605 = vrot.lane.b32.xlu0 %v372, 40
      %v2606 = vpop.permute.xlu0 %2605
      %2607 = vrot.lane.b32.xlu0 %v377, 40
      %v2608 = vpop.permute.xlu0 %2607
      %2609 = vrot.lane.b32.xlu0 %v382, 40
      %v2610 = vpop.permute.xlu0 %2609
      %2611 = vrot.lane.b32.xlu0 %v387, 40
      %v2612 = vpop.permute.xlu0 %2611
      %2613 = vrot.lane.b32.xlu0 %v392, 40
      %v2614 = vpop.permute.xlu0 %2613
      %2615 = vrot.lane.b32.xlu0 %v397, 40
      %v2616 = vpop.permute.xlu0 %2615
      %2617 = vrot.lane.b32.xlu0 %v402, 40
      %v2618 = vpop.permute.xlu0 %2617
      %2619 = vrot.lane.b32.xlu0 %v407, 40
      %v2620 = vpop.permute.xlu0 %2619
      %2621 = vrot.lane.b32.xlu0 %v412, 40
      %v2622 = vpop.permute.xlu0 %2621
      %2623 = vrot.lane.b32.xlu0 %v417, 40
      %v2624 = vpop.permute.xlu0 %2623
      %2625 = vrot.lane.b32.xlu0 %v422, 40
      %v2626 = vpop.permute.xlu0 %2625
      %2627 = vrot.lane.b32.xlu0 %v427, 40
      %v2628 = vpop.permute.xlu0 %2627
      %v2642 = vsel %vm652, %v2593, 0
      %v2645 = vsel %vm652, %v2594, 0
      %v2648 = vsel %vm652, %v2595, 0
      %v2651 = vsel %vm652, %v2596, 0
      %v2654 = vsel %vm652, %v2597, 0
      %v2657 = vsel %vm652, %v2598, 0
      %v2660 = vsel %vm652, %v2599, 0
      %v2663 = vsel %vm652, %v2600, 0
      %v2666 = vsel %vm652, %v2601, 0
      %v2669 = vsel %vm652, %v2602, 0
      %v2672 = vsel %vm652, %v2603, 0
      %v2675 = vsel %vm652, %v2604, 0
      %2677 = vmatprep.subr.mxu0 0.0
      %2678 = vmatpush1.msra.mxu0 0.0
      %2679 = vmatprep.subr.mxu0 0.0
      %2680 = vmatpush1.msra.mxu0 0.0
      %2681 = vmatprep.subr.mxu0 0.0
      %2682 = vmatpush1.msra.mxu0 0.0
      %2683 = vmatprep.subr.mxu0 0.0
      %2684 = vmatpush1.msra.mxu0 0.0
      %2685 = vmatprep.subr.mxu0 0.0
      %2686 = vmatpush1.msra.mxu0 %v2628
      %2687 = vmatprep.subr.mxu0 0.0
      %2688 = vmatpush1.msra.mxu0 %v2626
      %2689 = vmatprep.subr.mxu0 0.0
      %2690 = vmatpush1.msra.mxu0 %v2624
      %2691 = vmatprep.subr.mxu0 0.0
      %2692 = vmatpush1.msra.mxu0 %v2622
      %2693 = vmatprep.subr.mxu0 0.0
      %2694 = vmatpush1.msra.mxu0 %v2620
      %2695 = vmatprep.subr.mxu0 0.0
      %2696 = vmatpush1.msra.mxu0 %v2618
      %2697 = vmatprep.subr.mxu0 0.0
      %2698 = vmatpush1.msra.mxu0 %v2616
      %2699 = vmatprep.subr.mxu0 0.0
      %2700 = vmatpush1.msra.mxu0 %v2614
      %2701 = vmatprep.subr.mxu0 0.0
      %2702 = vmatpush1.msra.mxu0 %v2612
      %2703 = vmatprep.subr.mxu0 0.0
      %2704 = vmatpush1.msra.mxu0 %v2610
      %2705 = vmatprep.subr.mxu0 0.0
      %2706 = vmatpush1.msra.mxu0 %v2608
      %2707 = vmatprep.subr.mxu0 0.0
      %2708 = vmatpush1.msra.mxu0 %v2606
      %2709 = vmatprep.subr.mxu0 0.0
      %2710 = vmatpush2.msra.mxu0 0.0
      %2711 = vmatprep.subr.mxu0 0.0
      %2712 = vmatpush2.msra.mxu0 0.0
      %2713 = vmatprep.subr.mxu0 0.0
      %2714 = vmatpush2.msra.mxu0 0.0
      %2715 = vmatprep.subr.mxu0 0.0
      %2716 = vmatpush2.msra.mxu0 0.0
      %2717 = vmatprep.subr.mxu0 0.0
      %2718 = vmatpush2.msra.mxu0 0.0
      %2719 = vmatprep.subr.mxu0 0.0
      %2720 = vmatpush2.msra.mxu0 0.0
      %2721 = vmatprep.subr.mxu0 0.0
      %2722 = vmatpush2.msra.mxu0 0.0
      %2723 = vmatprep.subr.mxu0 0.0
      %2724 = vmatpush2.msra.mxu0 0.0
      %2725 = vmatprep.subr.mxu0 0.0
      %2726 = vmatpush2.msra.mxu0 0.0
      %2727 = vmatprep.subr.mxu0 0.0
      %2728 = vmatpush2.msra.mxu0 0.0
      %2729 = vmatprep.subr.mxu0 0.0
      %2730 = vmatpush2.msra.mxu0 0.0
      %2731 = vmatprep.subr.mxu0 0.0
      %2732 = vmatpush2.msra.mxu0 0.0
      %2733 = vmatprep.subr.mxu0 0.0
      %2734 = vmatpush2.msra.mxu0 0.0
      %2735 = vmatprep.subr.mxu0 0.0
      %2736 = vmatpush2.msra.mxu0 0.0
      %2737 = vmatprep.subr.mxu0 0.0
      %2738 = vmatpush2.msra.mxu0 0.0
      %2739 = vmatprep.subr.mxu0 0.0
      %2740 = vmatpush2.msra.mxu0 0.0
      %2741 = vmatprep.mubr.f32.mxu0 0.0
      %2742 = vmatmul.mubr.f32.gmra.mxu0 %v2642
      %v2743 = vpop.f32.mrf.mxu0
      %v2744 = vadd.f32 0.0, %v2743
      %v2745 = vpop.f32.mrf.mxu0
      %2746 = vmatprep.mubr.f32.mxu0 0.0
      %2747 = vmatmul.mubr.f32.gmra.mxu0 %v2645
      %v2748 = vpop.f32.mrf.mxu0
      %v2749 = vadd.f32 0.0, %v2748
      %v2750 = vpop.f32.mrf.mxu0
      %2751 = vmatprep.mubr.f32.mxu0 0.0
      %2752 = vmatmul.mubr.f32.gmra.mxu0 %v2648
      %v2753 = vpop.f32.mrf.mxu0
      %v2754 = vadd.f32 0.0, %v2753
      %v2755 = vpop.f32.mrf.mxu0
      %2756 = vmatprep.mubr.f32.mxu0 0.0
      %2757 = vmatmul.mubr.f32.gmra.mxu0 %v2651
      %v2758 = vpop.f32.mrf.mxu0
      %v2759 = vadd.f32 0.0, %v2758
      %v2760 = vpop.f32.mrf.mxu0
      %2761 = vmatprep.mubr.f32.mxu0 0.0
      %2762 = vmatmul.mubr.f32.gmra.mxu0 %v2654
      %v2763 = vpop.f32.mrf.mxu0
      %v2764 = vadd.f32 0.0, %v2763
      %v2765 = vpop.f32.mrf.mxu0
      %2766 = vmatprep.mubr.f32.mxu0 0.0
      %2767 = vmatmul.mubr.f32.gmra.mxu0 %v2657
      %v2768 = vpop.f32.mrf.mxu0
      %v2769 = vadd.f32 0.0, %v2768
      %v2770 = vpop.f32.mrf.mxu0
      %2771 = vmatprep.mubr.f32.mxu0 0.0
      %2772 = vmatmul.mubr.f32.gmra.mxu0 %v2660
      %v2773 = vpop.f32.mrf.mxu0
      %v2774 = vadd.f32 0.0, %v2773
      %v2775 = vpop.f32.mrf.mxu0
      %2776 = vmatprep.mubr.f32.mxu0 0.0
      %2777 = vmatmul.mubr.f32.gmra.mxu0 %v2663
      %v2778 = vpop.f32.mrf.mxu0
      %v2779 = vadd.f32 0.0, %v2778
      %v2780 = vpop.f32.mrf.mxu0
      %2781 = vmatprep.mubr.f32.mxu0 0.0
      %2782 = vmatmul.mubr.f32.gmra.mxu0 %v2666
      %v2783 = vpop.f32.mrf.mxu0
      %v2784 = vadd.f32 0.0, %v2783
      %v2785 = vpop.f32.mrf.mxu0
      %2786 = vmatprep.mubr.f32.mxu0 0.0
      %2787 = vmatmul.mubr.f32.gmra.mxu0 %v2669
      %v2788 = vpop.f32.mrf.mxu0
      %v2789 = vadd.f32 0.0, %v2788
      %v2790 = vpop.f32.mrf.mxu0
      %2791 = vmatprep.mubr.f32.mxu0 0.0
      %2792 = vmatmul.mubr.f32.gmra.mxu0 %v2672
      %v2793 = vpop.f32.mrf.mxu0
      %v2794 = vadd.f32 0.0, %v2793
      %v2795 = vpop.f32.mrf.mxu0
      %2796 = vmatprep.mubr.f32.mxu0 0.0
      %2797 = vmatmul.mubr.f32.gmra.mxu0 %v2675
      %v2798 = vpop.f32.mrf.mxu0
      %v2799 = vadd.f32 0.0, %v2798
      %v2800 = vpop.f32.mrf.mxu0
      %2801 = vdwg.mxu0
      %2814 = vrot.lane.b32.xlu0 %v2744, 24
      %v2815 = vpop.permute.xlu0 %2814
      %2816 = vrot.lane.b32.xlu0 %v2749, 24
      %v2817 = vpop.permute.xlu0 %2816
      %2818 = vrot.lane.b32.xlu0 %v2754, 24
      %v2819 = vpop.permute.xlu0 %2818
      %2820 = vrot.lane.b32.xlu0 %v2759, 24
      %v2821 = vpop.permute.xlu0 %2820
      %2822 = vrot.lane.b32.xlu0 %v2764, 24
      %v2823 = vpop.permute.xlu0 %2822
      %2824 = vrot.lane.b32.xlu0 %v2769, 24
      %v2825 = vpop.permute.xlu0 %2824
      %2826 = vrot.lane.b32.xlu0 %v2774, 24
      %v2827 = vpop.permute.xlu0 %2826
      %2828 = vrot.lane.b32.xlu0 %v2779, 24
      %v2829 = vpop.permute.xlu0 %2828
      %2830 = vrot.lane.b32.xlu0 %v2784, 24
      %v2831 = vpop.permute.xlu0 %2830
      %2832 = vrot.lane.b32.xlu0 %v2789, 24
      %v2833 = vpop.permute.xlu0 %2832
      %2834 = vrot.lane.b32.xlu0 %v2794, 24
      %v2835 = vpop.permute.xlu0 %2834
      %2836 = vrot.lane.b32.xlu0 %v2799, 24
      %v2837 = vpop.permute.xlu0 %2836
      %vm2850 = vcmask 261312
      %2851 = vst.msk [vmem:[#allocation2] sm:$0xff] %vm2850, %v2815
      %2852 = vst.msk [vmem:[#allocation2 + $0x8] sm:$0xff] %vm2850, %v2817
      %2853 = vst.msk [vmem:[#allocation2 + $0x10] sm:$0xff] %vm2850, %v2819
      %2854 = vst.msk [vmem:[#allocation2 + $0x18] sm:$0xff] %vm2850, %v2821
      %2855 = vst.msk [vmem:[#allocation2 + $0x20] sm:$0xff] %vm2850, %v2823
      %2856 = vst.msk [vmem:[#allocation2 + $0x28] sm:$0xff] %vm2850, %v2825
      %2857 = vst.msk [vmem:[#allocation2 + $0x30] sm:$0xff] %vm2850, %v2827
      %2858 = vst.msk [vmem:[#allocation2 + $0x38] sm:$0xff] %vm2850, %v2829
      %2859 = vst.msk [vmem:[#allocation2 + $0x40] sm:$0xff] %vm2850, %v2831
      %2860 = vst.msk [vmem:[#allocation2 + $0x48] sm:$0xff] %vm2850, %v2833
      %2861 = vst.msk [vmem:[#allocation2 + $0x50] sm:$0xff] %vm2850, %v2835
      %2862 = vst.msk [vmem:[#allocation2 + $0x58] sm:$0xff] %vm2850, %v2837
      %v2863 = vld [vmem:[#allocation2] sm:$0xff]
      %v2864 = vld [vmem:[#allocation2 + $0x8] sm:$0xff]
      %v2865 = vld [vmem:[#allocation2 + $0x10] sm:$0xff]
      %v2866 = vld [vmem:[#allocation2 + $0x18] sm:$0xff]
      %v2867 = vld [vmem:[#allocation2 + $0x20] sm:$0xff]
      %v2868 = vld [vmem:[#allocation2 + $0x28] sm:$0xff]
      %v2869 = vld [vmem:[#allocation2 + $0x30] sm:$0xff]
      %v2870 = vld [vmem:[#allocation2 + $0x38] sm:$0xff]
      %v2871 = vld [vmem:[#allocation2 + $0x40] sm:$0xff]
      %v2872 = vld [vmem:[#allocation2 + $0x48] sm:$0xff]
      %v2873 = vld [vmem:[#allocation2 + $0x50] sm:$0xff]
      %v2874 = vld [vmem:[#allocation2 + $0x58] sm:$0xff]
      %v2875 = vld [vmem:[%s2] sm:$0xff]
      %v2876 = vld [vmem:[%s2 + $0x8] sm:$0xff]
      %v2877 = vld [vmem:[%s2 + $0x10] sm:$0xff]
      %v2878 = vld [vmem:[%s2 + $0x18] sm:$0xff]
      %v2879 = vld [vmem:[%s3] sm:$0x1]
      %v2881 = vlaneseq
      %v2882 = vshrl.u32 %v2881, 7
      %v2883 = vsub.s32 0, %v2882
      %v2884 = vrot.slane %v2879, %v2883
      %v2887 = vsel %vm268, %v2863, 0
      %v2890 = vsel %vm268, %v2864, 0
      %v2893 = vsel %vm268, %v2865, 0
      %v2896 = vsel %vm268, %v2866, 0
      %v2899 = vsel %vm268, %v2867, 0
      %v2902 = vsel %vm268, %v2868, 0
      %v2905 = vsel %vm268, %v2869, 0
      %v2908 = vsel %vm268, %v2870, 0
      %v2911 = vsel %vm268, %v2871, 0
      %v2914 = vsel %vm268, %v2872, 0
      %v2917 = vsel %vm268, %v2873, 0
      %v2920 = vsel %vm268, %v2874, 0
      %2922 = vmatprep.subr.mxu0 0.0
      %2923 = vmatpush1.msra.mxu0 0.0
      %2924 = vmatprep.subr.mxu0 0.0
      %2925 = vmatpush1.msra.mxu0 0.0
      %2926 = vmatprep.subr.mxu0 0.0
      %2927 = vmatpush1.msra.mxu0 0.0
      %2928 = vmatprep.subr.mxu0 0.0
      %2929 = vmatpush1.msra.mxu0 0.0
      %2930 = vmatprep.subr.mxu0 0.0
      %2931 = vmatpush1.msra.mxu0 0.0
      %2932 = vmatprep.subr.mxu0 0.0
      %2933 = vmatpush1.msra.mxu0 0.0
      %2934 = vmatprep.subr.mxu0 0.0
      %2935 = vmatpush1.msra.mxu0 0.0
      %2936 = vmatprep.subr.mxu0 0.0
      %2937 = vmatpush1.msra.mxu0 0.0
      %2938 = vmatprep.subr.mxu0 0.0
      %2939 = vmatpush1.msra.mxu0 0.0
      %2940 = vmatprep.subr.mxu0 0.0
      %2941 = vmatpush1.msra.mxu0 0.0
      %2942 = vmatprep.subr.mxu0 0.0
      %2943 = vmatpush1.msra.mxu0 0.0
      %2944 = vmatprep.subr.mxu0 0.0
      %2945 = vmatpush1.msra.mxu0 0.0
      %2946 = vmatprep.subr.mxu0 0.0
      %2947 = vmatpush1.msra.mxu0 %v2878
      %2948 = vmatprep.subr.mxu0 0.0
      %2949 = vmatpush1.msra.mxu0 %v2877
      %2950 = vmatprep.subr.mxu0 0.0
      %2951 = vmatpush1.msra.mxu0 %v2876
      %2952 = vmatprep.subr.mxu0 0.0
      %2953 = vmatpush1.msra.mxu0 %v2875
      %2954 = vmatprep.subr.mxu0 0.0
      %2955 = vmatpush2.msra.mxu0 0.0
      %2956 = vmatprep.subr.mxu0 0.0
      %2957 = vmatpush2.msra.mxu0 0.0
      %2958 = vmatprep.subr.mxu0 0.0
      %2959 = vmatpush2.msra.mxu0 0.0
      %2960 = vmatprep.subr.mxu0 0.0
      %2961 = vmatpush2.msra.mxu0 0.0
      %2962 = vmatprep.subr.mxu0 0.0
      %2963 = vmatpush2.msra.mxu0 0.0
      %2964 = vmatprep.subr.mxu0 0.0
      %2965 = vmatpush2.msra.mxu0 0.0
      %2966 = vmatprep.subr.mxu0 0.0
      %2967 = vmatpush2.msra.mxu0 0.0
      %2968 = vmatprep.subr.mxu0 0.0
      %2969 = vmatpush2.msra.mxu0 0.0
      %2970 = vmatprep.subr.mxu0 0.0
      %2971 = vmatpush2.msra.mxu0 0.0
      %2972 = vmatprep.subr.mxu0 0.0
      %2973 = vmatpush2.msra.mxu0 0.0
      %2974 = vmatprep.subr.mxu0 0.0
      %2975 = vmatpush2.msra.mxu0 0.0
      %2976 = vmatprep.subr.mxu0 0.0
      %2977 = vmatpush2.msra.mxu0 0.0
      %2978 = vmatprep.subr.mxu0 0.0
      %2979 = vmatpush2.msra.mxu0 0.0
      %2980 = vmatprep.subr.mxu0 0.0
      %2981 = vmatpush2.msra.mxu0 0.0
      %2982 = vmatprep.subr.mxu0 0.0
      %2983 = vmatpush2.msra.mxu0 0.0
      %2984 = vmatprep.subr.mxu0 0.0
      %2985 = vmatpush2.msra.mxu0 0.0
      %2986 = vmatprep.mubr.f32.mxu0 0.0
      %2987 = vmatmul.mubr.f32.gmra.mxu0 %v2887
      %v2988 = vpop.f32.mrf.mxu0
      %v2989 = vadd.f32 %v2884, %v2988
      %v2990 = vpop.f32.mrf.mxu0
      %2991 = vmatprep.mubr.f32.mxu0 0.0
      %2992 = vmatmul.mubr.f32.gmra.mxu0 %v2890
      %v2993 = vpop.f32.mrf.mxu0
      %v2994 = vadd.f32 %v2884, %v2993
      %v2995 = vpop.f32.mrf.mxu0
      %2996 = vmatprep.mubr.f32.mxu0 0.0
      %2997 = vmatmul.mubr.f32.gmra.mxu0 %v2893
      %v2998 = vpop.f32.mrf.mxu0
      %v2999 = vadd.f32 %v2884, %v2998
      %v3000 = vpop.f32.mrf.mxu0
      %3001 = vmatprep.mubr.f32.mxu0 0.0
      %3002 = vmatmul.mubr.f32.gmra.mxu0 %v2896
      %v3003 = vpop.f32.mrf.mxu0
      %v3004 = vadd.f32 %v2884, %v3003
      %v3005 = vpop.f32.mrf.mxu0
      %3006 = vmatprep.mubr.f32.mxu0 0.0
      %3007 = vmatmul.mubr.f32.gmra.mxu0 %v2899
      %v3008 = vpop.f32.mrf.mxu0
      %v3009 = vadd.f32 %v2884, %v3008
      %v3010 = vpop.f32.mrf.mxu0
      %3011 = vmatprep.mubr.f32.mxu0 0.0
      %3012 = vmatmul.mubr.f32.gmra.mxu0 %v2902
      %v3013 = vpop.f32.mrf.mxu0
      %v3014 = vadd.f32 %v2884, %v3013
      %v3015 = vpop.f32.mrf.mxu0
      %3016 = vmatprep.mubr.f32.mxu0 0.0
      %3017 = vmatmul.mubr.f32.gmra.mxu0 %v2905
      %v3018 = vpop.f32.mrf.mxu0
      %v3019 = vadd.f32 %v2884, %v3018
      %v3020 = vpop.f32.mrf.mxu0
      %3021 = vmatprep.mubr.f32.mxu0 0.0
      %3022 = vmatmul.mubr.f32.gmra.mxu0 %v2908
      %v3023 = vpop.f32.mrf.mxu0
      %v3024 = vadd.f32 %v2884, %v3023
      %v3025 = vpop.f32.mrf.mxu0
      %3026 = vmatprep.mubr.f32.mxu0 0.0
      %3027 = vmatmul.mubr.f32.gmra.mxu0 %v2911
      %v3028 = vpop.f32.mrf.mxu0
      %v3029 = vadd.f32 %v2884, %v3028
      %v3030 = vpop.f32.mrf.mxu0
      %3031 = vmatprep.mubr.f32.mxu0 0.0
      %3032 = vmatmul.mubr.f32.gmra.mxu0 %v2914
      %v3033 = vpop.f32.mrf.mxu0
      %v3034 = vadd.f32 %v2884, %v3033
      %v3035 = vpop.f32.mrf.mxu0
      %3036 = vmatprep.mubr.f32.mxu0 0.0
      %3037 = vmatmul.mubr.f32.gmra.mxu0 %v2917
      %v3038 = vpop.f32.mrf.mxu0
      %v3039 = vadd.f32 %v2884, %v3038
      %v3040 = vpop.f32.mrf.mxu0
      %3041 = vmatprep.mubr.f32.mxu0 0.0
      %3042 = vmatmul.mubr.f32.gmra.mxu0 %v2920
      %v3043 = vpop.f32.mrf.mxu0
      %v3044 = vadd.f32 %v2884, %v3043
      %v3045 = vpop.f32.mrf.mxu0
      %3046 = vdwg.mxu0
      %3047 = vst.msk [vmem:[%s226] sm:$0xff] %vm268, %v2989
      %3048 = vst.msk [vmem:[%s226 + $0x8] sm:$0xff] %vm268, %v2994
      %3049 = vst.msk [vmem:[%s226 + $0x10] sm:$0xff] %vm268, %v2999
      %3050 = vst.msk [vmem:[%s226 + $0x18] sm:$0xff] %vm268, %v3004
      %3051 = vst.msk [vmem:[%s226 + $0x20] sm:$0xff] %vm268, %v3009
      %3052 = vst.msk [vmem:[%s226 + $0x28] sm:$0xff] %vm268, %v3014
      %3053 = vst.msk [vmem:[%s226 + $0x30] sm:$0xff] %vm268, %v3019
      %3054 = vst.msk [vmem:[%s226 + $0x38] sm:$0xff] %vm268, %v3024
      %3055 = vst.msk [vmem:[%s226 + $0x40] sm:$0xff] %vm268, %v3029
      %3056 = vst.msk [vmem:[%s226 + $0x48] sm:$0xff] %vm268, %v3034
      %3057 = vst.msk [vmem:[%s226 + $0x50] sm:$0xff] %vm268, %v3039
      %3058 = vst.msk [vmem:[%s226 + $0x58] sm:$0xff] %vm268, %v3044
      %s3059 = smul.u32 12, %s16
      %p3060 = scmp.lt.s32.totalorder %s3059, 23
      %s3061 = scalar_select %p3060, %s3059, 23
      %s3062 = smul.addr %s3061, 8
      %s3063 = scalar_lea.vmem %s5, %s3062
      // Predicated region
      $region41: #{tpu_custom_call.1} parent=39 // pred_check
        %p3064 = pneg %p144
      $region42: #{tpu_custom_call.1} parent=39 // pred_check_branch
        %3066 = sbr.rel (%p3064) target = $region44
      $region43: #{tpu_custom_call.1} parent=39 // pred_region
        %s3067 = smul.u32 12, %s16
      $region44: #{tpu_custom_call.1} parent=39 // pred_fallthru
        _
    $region40: #{tpu_custom_call.1} parent=5 // pred_fallthru
      _
    %p3068 = scmp.le.s32.totalorder 2, %s11
    // Predicated region
    $region45: #{tpu_custom_call.1} parent=5 // pred_check
      %p3069 = pneg %p3068
    $region46: #{tpu_custom_call.1} parent=5 // pred_check_branch
      %3071 = sbr.rel (%p3069) target = $region48
    $region47: #{tpu_custom_call.1} parent=5 // pred_region
      %s3072 = ssub.s32 %s11, 2
      // Predicated region
      $region49: #{tpu_custom_call.1} parent=47 // pred_check
        %p3073 = pneg %p150
      $region50: #{tpu_custom_call.1} parent=47 // pred_check_branch
        %3075 = sbr.rel (%p3073) target = $region52
      $region51: #{tpu_custom_call.1} parent=47 // pred_region
        %s3076 = smul.u32 12, %s17
        %p3077 = scmp.lt.s32.totalorder %s3076, 23
        %s3078 = scalar_select %p3077, %s3076, 23
        %s3079 = smul.addr %s3078, 8
        %s3080 = scalar_lea.vmem %s5, %s3079
      $region52: #{tpu_custom_call.1} parent=47 // pred_fallthru
        _
    $region48: #{tpu_custom_call.1} parent=5 // pred_fallthru
      _
  $region6: #{tpu_custom_call.1} parent=0 // loop_footer
    %s15 = sadd.s32 1, %s11
  $region7: #{tpu_custom_call.1} parent=0 // loop_footer_branch
    %10 = sbr.rel target = $region3
  $region8: #{tpu_custom_call.1} parent=0 // loop_exit
    _

</llo_original>
